<compile_context>
chip_gen: v7x
topology: tpu7x:2x2x1
jax: 0.10.0
libtpu: 0.0.40
codegen_flags: <defaults>
</compile_context>

<pallas_src>
import math
import functools

import jax
import jax.numpy as jnp
from jax import lax
from jax.experimental import pallas as pl
from jax.experimental.pallas import tpu as pltpu


def encoder_block_kernel(x_ref, wqkv_ref, bqkv_ref, wo_h_ref, bo_ref,
                         alpha_ref, beta_ref, w1_ref, b1_ref, w2_ref, b2_ref,
                         o_ref, *, num_heads, head_size, eps):
    x = x_ref[...].astype(jnp.float32)                     # (S, E)
    S, E = x.shape
    H, d = num_heads, head_size
    alpha = alpha_ref[...]                                 # (1, E) f32
    beta = beta_ref[...]                                   # (1, E) f32

    def layer_norm(h):
        mean = jnp.mean(h, axis=-1, keepdims=True)
        # torch.std default: unbiased (N-1)
        var = jnp.sum((h - mean) ** 2, axis=-1, keepdims=True) * (1.0 / (E - 1))
        inv = 1.0 / (jnp.sqrt(var) + eps)      # exact: only (S,1) elements
        return alpha * (h - mean) * inv + beta

    # ---------------- attention sub-layer (pre-norm residual) ----------------
    h = layer_norm(x).astype(jnp.bfloat16)
    # fused QKV: one wide MXU matmul (1/sqrt(d) already folded into Q columns)
    qkv = jnp.dot(h, wqkv_ref[...],
                  preferred_element_type=jnp.float32) + bqkv_ref[...]   # (S, 3E)
    qkv = qkv.astype(jnp.bfloat16)            # single down-cast before slicing

    # head-major (H, S, d) views (bf16 copies; see TODO re: einshape relayout)
    q_h = jnp.stack([qkv[:,         hh * d:(hh + 1) * d]          for hh in range(H)], 0)
    k_h = jnp.stack([qkv[:, E +     hh * d:E + (hh + 1) * d]      for hh in range(H)], 0)
    v_h = jnp.stack([qkv[:, 2 * E + hh * d:2 * E + (hh + 1) * d]  for hh in range(H)], 0)

    # batched QK^T: contract last dims, batch over heads (scale pre-folded)
    scores = lax.dot_general(
        q_h, k_h, (((2,), (2,)), ((0,), (0,))),
        preferred_element_type=jnp.float32)                        # (H, S, S)
    scores = scores - jnp.max(scores, axis=-1, keepdims=True)
    p = jnp.exp(scores)                                            # unnormalized
    denom = jnp.sum(p, axis=-1, keepdims=True)                     # (H, S, 1)
    ctx = lax.dot_general(
        p.astype(jnp.bfloat16), v_h, (((2,), (1,)), ((0,), (0,))),
        preferred_element_type=jnp.float32)                        # (H, S, d)
    # deferred softmax normalization: H*S*d multiplies instead of H*S*S
    ctx = ctx * pl.reciprocal(denom, approx=True)

    # output projection without any concat: (H,S,d) x (H,d,E) -> (H,S,E), sum heads
    out_h = lax.dot_general(
        ctx.astype(jnp.bfloat16), wo_h_ref[...], (((2,), (1,)), ((0,), (0,))),
        preferred_element_type=jnp.float32)                        # (H, S, E)
    attn_out = jnp.sum(out_h, axis=0) + bo_ref[...]                # (S, E)
    x = x + attn_out                                               # residual 1

    # ---------------- feed-forward sub-layer (pre-norm residual) -------------
    h2 = layer_norm(x).astype(jnp.bfloat16)
    ff = jnp.dot(h2, w1_ref[...],
                 preferred_element_type=jnp.float32) + b1_ref[...]
    ff = jnp.maximum(ff, 0.0).astype(jnp.bfloat16)                 # ReLU
    ff = jnp.dot(ff, w2_ref[...],
                 preferred_element_type=jnp.float32) + b2_ref[...]
    o_ref[...] = (x + ff).astype(o_ref.dtype)                      # residual 2


def encoder_block(x, params, *, num_heads, src_mask=None):
    # src_mask accepted for signature parity; the reference attention forward
    # never consumes a mask.
    del src_mask
    B, S, E = x.shape
    HID = params["w1"].shape[1]
    assert E % num_heads == 0, "embedding size must be divisible by num_heads"
    head_size = E // num_heads

    cdt = jnp.bfloat16
    inv_scale = 1.0 / math.sqrt(head_size)
    # host-side packing:
    #  * fused QKV weight/bias with 1/sqrt(d) folded into the Q block
    #  * wo reshaped head-major (H, d, E) so the kernel never concatenates heads
    wqkv = jnp.concatenate(
        [params["wq"] * inv_scale, params["wk"], params["wv"]], axis=1).astype(cdt)
    bqkv = jnp.concatenate(
        [params["bq"] * inv_scale, params["bk"], params["bv"]], axis=1).astype(jnp.float32)
    wo_h = params["wo"].reshape(num_heads, head_size, E).astype(cdt)
    consts = (
        wqkv, bqkv,
        wo_h, params["bo"].astype(jnp.float32),
        params["alpha"].astype(jnp.float32), params["beta"].astype(jnp.float32),
        params["w1"].astype(cdt), params["b1"].astype(jnp.float32),
        params["w2"].astype(cdt), params["b2"].astype(jnp.float32),
    )

    def const_spec(a):
        shape = a.shape
        # constant index map -> single-buffer (no pointless double-buffering)
        return pl.BlockSpec(shape, lambda b: (0,) * len(shape),
                            pipeline_mode=pl.Buffered(1))

    act_in_spec = pl.BlockSpec((pl.Squeezed(), S, E), lambda b: (b, 0, 0))
    act_out_spec = pl.BlockSpec((pl.Squeezed(), S, E), lambda b: (b, 0, 0))

    kernel = functools.partial(encoder_block_kernel,
                               num_heads=num_heads,
                               head_size=head_size,
                               eps=1e-6)

    # explicit VMEM budget: single-buffered constants + double-buffered x/out
    # tiles + fp32/bf16 intermediates, capped generation-aware (v7x = 64 MiB).
    const_bytes = sum(int(a.size) * a.dtype.itemsize for a in consts)
    io_bytes = 2 * 2 * S * E * x.dtype.itemsize
    scratch_bytes = 4 * (S * 3 * E + 3 * num_heads * S * head_size
                         + 2 * num_heads * S * S + num_heads * S * E
                         + S * HID + 6 * S * E)
    need = 2 * (const_bytes + io_bytes + scratch_bytes) + (8 << 20)
    try:
        vmem_cap = int(pltpu.get_tpu_info().vmem_capacity_bytes)
    except Exception:
        vmem_cap = 64 << 20          # conservative (v7x per-TensorCore) fallback
    vmem_limit = int(max(min(need, vmem_cap - (8 << 20)), 4 << 20))

    return pl.pallas_call(
        kernel,
        out_shape=jax.ShapeDtypeStruct((B, S, E), x.dtype),
        grid_spec=pltpu.PrefetchScalarGridSpec(
            num_scalar_prefetch=0,
            grid=(B,),
            in_specs=[act_in_spec] + [const_spec(a) for a in consts],
            out_specs=act_out_spec,
        ),
        compiler_params=pltpu.CompilerParams(
            dimension_semantics=("parallel",),
            vmem_limit_bytes=vmem_limit),
    )(x, *consts)


def encoder_block_reference(x, params, *, num_heads):
    """Pure-JAX fp32 reference mirroring the PyTorch semantics (eval mode)."""
    B, S, E = x.shape
    head_size = E // num_heads
    eps = 1e-6

    def layer_norm(h):
        mean = jnp.mean(h, axis=-1, keepdims=True)
        std = jnp.std(h, axis=-1, keepdims=True, ddof=1)
        return params["alpha"] * (h - mean) / (std + eps) + params["beta"]

    h = layer_norm(x)
    q = h @ params["wq"] + params["bq"]
    k = h @ params["wk"] + params["bk"]
    v = h @ params["wv"] + params["bv"]
    q = q.reshape(B, S, num_heads, head_size).transpose(0, 2, 1, 3)
    k = k.reshape(B, S, num_heads, head_size).transpose(0, 2, 1, 3)
    v = v.reshape(B, S, num_heads, head_size).transpose(0, 2, 1, 3)
    scores = jnp.einsum("bhqd,bhkd->bhqk", q, k) / math.sqrt(head_size)
    p = jax.nn.softmax(scores, axis=-1)
    attn = jnp.einsum("bhqk,bhkd->bhqd", p, v)
    attn = attn.transpose(0, 2, 1, 3).reshape(B, S, E)
    x = x + attn @ params["wo"] + params["bo"]

    h = layer_norm(x)
    ff = jnp.maximum(h @ params["w1"] + params["b1"], 0.0)
    ff = ff @ params["w2"] + params["b2"]
    return x + ff


if __name__ == "__main__":
    B, S, E, NUM_HEADS, HID = 2, 8, 32, 4, 64

    key = jax.random.PRNGKey(0)
    keys = jax.random.split(key, 16)

    def init(k, shape, scale=0.05):
        return jax.random.normal(k, shape, jnp.float32) * scale

    x = jax.random.normal(keys[0], (B, S, E), jnp.float32)
    params = {
        "wq": init(keys[1], (E, E)),   "bq": init(keys[2], (1, E)),
        "wk": init(keys[3], (E, E)),   "bk": init(keys[4], (1, E)),
        "wv": init(keys[5], (E, E)),   "bv": init(keys[6], (1, E)),
        "wo": init(keys[7], (E, E)),   "bo": init(keys[8], (1, E)),
        "alpha": jnp.ones((1, E), jnp.float32),
        "beta":  jnp.zeros((1, E), jnp.float32),
        "w1": init(keys[9], (E, HID)),  "b1": init(keys[10], (1, HID)),
        "w2": init(keys[11], (HID, E)), "b2": init(keys[12], (1, E)),
    }
    src_mask = None  # unused by the reference forward

    out = encoder_block(x, params, num_heads=NUM_HEADS, src_mask=src_mask)
    out = jax.block_until_ready(out)

    ref = encoder_block_reference(x, params, num_heads=NUM_HEADS)
    assert out.shape == (B, S, E)
    # bf16 matmul operands + approx softmax-denominator reciprocal; the LN
    # reciprocal is now exact, so the tolerance is tightened vs the previous rev.
    assert jnp.allclose(out, ref, atol=1e-2, rtol=1e-2), (
        f"max abs diff = {jnp.max(jnp.abs(out - ref))}")
    print("KERNEL_OK")
</pallas_src>

<mosaic_0001>
module attributes {stable_mosaic.version = 11 : i64} {
  func.func @encoder_block_kernel(%arg0: i32, %arg1: memref<1x8x32xf32, #tpu.memory_space<vmem>>, %arg2: memref<32x96xbf16, #tpu.memory_space<vmem>>, %arg3: memref<1x96xf32, #tpu.memory_space<vmem>>, %arg4: memref<4x8x32xbf16, #tpu.memory_space<vmem>>, %arg5: memref<1x32xf32, #tpu.memory_space<vmem>>, %arg6: memref<1x32xf32, #tpu.memory_space<vmem>>, %arg7: memref<1x32xf32, #tpu.memory_space<vmem>>, %arg8: memref<32x64xbf16, #tpu.memory_space<vmem>>, %arg9: memref<1x64xf32, #tpu.memory_space<vmem>>, %arg10: memref<64x32xbf16, #tpu.memory_space<vmem>>, %arg11: memref<1x32xf32, #tpu.memory_space<vmem>>, %arg12: memref<1x8x32xf32, #tpu.memory_space<vmem>>) attributes {dimension_semantics = [#tpu.dimension_semantics<parallel>], iteration_bounds = array<i64: 2>, scalar_prefetch = 0 : i64, scratch_operands = 0 : i64, tpu.core_type = #tpu.core_type<tc>, window_params = [{transform_indices = @transform_0, window_bounds = array<i64: 1, 8, 32>}, {pipeline_mode = #tpu.pipeline_mode<synchronous>, transform_indices = @transform_1, window_bounds = array<i64: 32, 96>}, {pipeline_mode = #tpu.pipeline_mode<synchronous>, transform_indices = @transform_2, window_bounds = array<i64: 1, 96>}, {pipeline_mode = #tpu.pipeline_mode<synchronous>, transform_indices = @transform_3, window_bounds = array<i64: 4, 8, 32>}, {pipeline_mode = #tpu.pipeline_mode<synchronous>, transform_indices = @transform_4, window_bounds = array<i64: 1, 32>}, {pipeline_mode = #tpu.pipeline_mode<synchronous>, transform_indices = @transform_5, window_bounds = array<i64: 1, 32>}, {pipeline_mode = #tpu.pipeline_mode<synchronous>, transform_indices = @transform_6, window_bounds = array<i64: 1, 32>}, {pipeline_mode = #tpu.pipeline_mode<synchronous>, transform_indices = @transform_7, window_bounds = array<i64: 32, 64>}, {pipeline_mode = #tpu.pipeline_mode<synchronous>, transform_indices = @transform_8, window_bounds = array<i64: 1, 64>}, {pipeline_mode = #tpu.pipeline_mode<synchronous>, transform_indices = @transform_9, window_bounds = array<i64: 64, 32>}, {pipeline_mode = #tpu.pipeline_mode<synchronous>, transform_indices = @transform_10, window_bounds = array<i64: 1, 32>}, {transform_indices = @transform_11, window_bounds = array<i64: 1, 8, 32>}]} {
    %c0 = arith.constant 0 : index
    %c0_0 = arith.constant 0 : index
    %c0_1 = arith.constant 0 : index
    %0 = vector.load %arg1[%c0, %c0_0, %c0_1] : memref<1x8x32xf32, #tpu.memory_space<vmem>>, vector<1x8x32xf32>
    %1 = vector.shape_cast %0 : vector<1x8x32xf32> to vector<8x32xf32>
    %c0_2 = arith.constant 0 : index
    %c0_3 = arith.constant 0 : index
    %2 = vector.load %arg6[%c0_2, %c0_3] : memref<1x32xf32, #tpu.memory_space<vmem>>, vector<1x32xf32>
    %c0_4 = arith.constant 0 : index
    %c0_5 = arith.constant 0 : index
    %3 = vector.load %arg7[%c0_4, %c0_5] : memref<1x32xf32, #tpu.memory_space<vmem>>, vector<1x32xf32>
    %cst = arith.constant dense<0.000000e+00> : vector<8xf32>
    %4 = vector.multi_reduction <add>, %1, %cst [1] : vector<8x32xf32> to vector<8xf32>
    %5 = vector.shape_cast %4 : vector<8xf32> to vector<8x1xf32>
    %cst_6 = arith.constant 3.200000e+01 : f32
    %6 = vector.broadcast %cst_6 : f32 to vector<8x1xf32>
    %7 = arith.divf %5, %6 : vector<8x1xf32>
    %8 = vector.broadcast %7 : vector<8x1xf32> to vector<8x32xf32>
    %9 = arith.subf %1, %8 : vector<8x32xf32>
    %10 = arith.mulf %9, %9 : vector<8x32xf32>
    %cst_7 = arith.constant dense<0.000000e+00> : vector<8xf32>
    %11 = vector.multi_reduction <add>, %10, %cst_7 [1] : vector<8x32xf32> to vector<8xf32>
    %12 = vector.shape_cast %11 : vector<8xf32> to vector<8x1xf32>
    %cst_8 = arith.constant 0.0322580636 : f32
    %13 = vector.broadcast %cst_8 : f32 to vector<8x1xf32>
    %14 = arith.mulf %12, %13 : vector<8x1xf32>
    %15 = math.sqrt %14 : vector<8x1xf32>
    %cst_9 = arith.constant 9.99999997E-7 : f32
    %16 = vector.broadcast %cst_9 : f32 to vector<8x1xf32>
    %17 = arith.addf %15, %16 : vector<8x1xf32>
    %cst_10 = arith.constant 1.000000e+00 : f32
    %18 = vector.broadcast %cst_10 : f32 to vector<8x1xf32>
    %19 = arith.divf %18, %17 : vector<8x1xf32>
    %20 = vector.broadcast %7 : vector<8x1xf32> to vector<8x32xf32>
    %21 = arith.subf %1, %20 : vector<8x32xf32>
    %22 = vector.broadcast %2 : vector<1x32xf32> to vector<8x32xf32>
    %23 = arith.mulf %22, %21 : vector<8x32xf32>
    %24 = vector.broadcast %19 : vector<8x1xf32> to vector<8x32xf32>
    %25 = arith.mulf %23, %24 : vector<8x32xf32>
    %26 = vector.broadcast %3 : vector<1x32xf32> to vector<8x32xf32>
    %27 = arith.addf %25, %26 : vector<8x32xf32>
    %28 = arith.truncf %27 : vector<8x32xf32> to vector<8x32xbf16>
    %c0_11 = arith.constant 0 : index
    %c0_12 = arith.constant 0 : index
    %29 = vector.load %arg2[%c0_11, %c0_12] : memref<32x96xbf16, #tpu.memory_space<vmem>>, vector<32x96xbf16>
    %cst_13 = arith.constant dense<0.000000e+00> : vector<8x96xf32>
    %30 = tpu.matmul %28, %29, %cst_13 {dimension_numbers = #tpu.dot_dimension_numbers<[1], [0], [0], [1], [0, 0, 1, 1], [], []>} : vector<8x32xbf16>, vector<32x96xbf16>, vector<8x96xf32> -> vector<8x96xf32>
    %c0_14 = arith.constant 0 : index
    %c0_15 = arith.constant 0 : index
    %31 = vector.load %arg3[%c0_14, %c0_15] : memref<1x96xf32, #tpu.memory_space<vmem>>, vector<1x96xf32>
    %32 = vector.broadcast %31 : vector<1x96xf32> to vector<8x96xf32>
    %33 = arith.addf %30, %32 : vector<8x96xf32>
    %34 = arith.truncf %33 : vector<8x96xf32> to vector<8x96xbf16>
    %35 = vector.extract_strided_slice %34 {offsets = [0, 0], sizes = [8, 8], strides = [1, 1]} : vector<8x96xbf16> to vector<8x8xbf16>
    %36 = vector.extract_strided_slice %34 {offsets = [0, 8], sizes = [8, 8], strides = [1, 1]} : vector<8x96xbf16> to vector<8x8xbf16>
    %37 = vector.extract_strided_slice %34 {offsets = [0, 16], sizes = [8, 8], strides = [1, 1]} : vector<8x96xbf16> to vector<8x8xbf16>
    %38 = vector.extract_strided_slice %34 {offsets = [0, 24], sizes = [8, 8], strides = [1, 1]} : vector<8x96xbf16> to vector<8x8xbf16>
    %39 = vector.shape_cast %35 : vector<8x8xbf16> to vector<1x8x8xbf16>
    %40 = vector.shape_cast %36 : vector<8x8xbf16> to vector<1x8x8xbf16>
    %41 = vector.shape_cast %37 : vector<8x8xbf16> to vector<1x8x8xbf16>
    %42 = vector.shape_cast %38 : vector<8x8xbf16> to vector<1x8x8xbf16>
    %43 = tpu.concatenate %39, %40, %41, %42 in 0 : vector<1x8x8xbf16>, vector<1x8x8xbf16>, vector<1x8x8xbf16>, vector<1x8x8xbf16> -> vector<4x8x8xbf16>
    %44 = vector.extract_strided_slice %34 {offsets = [0, 32], sizes = [8, 8], strides = [1, 1]} : vector<8x96xbf16> to vector<8x8xbf16>
    %45 = vector.extract_strided_slice %34 {offsets = [0, 40], sizes = [8, 8], strides = [1, 1]} : vector<8x96xbf16> to vector<8x8xbf16>
    %46 = vector.extract_strided_slice %34 {offsets = [0, 48], sizes = [8, 8], strides = [1, 1]} : vector<8x96xbf16> to vector<8x8xbf16>
    %47 = vector.extract_strided_slice %34 {offsets = [0, 56], sizes = [8, 8], strides = [1, 1]} : vector<8x96xbf16> to vector<8x8xbf16>
    %48 = vector.shape_cast %44 : vector<8x8xbf16> to vector<1x8x8xbf16>
    %49 = vector.shape_cast %45 : vector<8x8xbf16> to vector<1x8x8xbf16>
    %50 = vector.shape_cast %46 : vector<8x8xbf16> to vector<1x8x8xbf16>
    %51 = vector.shape_cast %47 : vector<8x8xbf16> to vector<1x8x8xbf16>
    %52 = tpu.concatenate %48, %49, %50, %51 in 0 : vector<1x8x8xbf16>, vector<1x8x8xbf16>, vector<1x8x8xbf16>, vector<1x8x8xbf16> -> vector<4x8x8xbf16>
    %53 = vector.extract_strided_slice %34 {offsets = [0, 64], sizes = [8, 8], strides = [1, 1]} : vector<8x96xbf16> to vector<8x8xbf16>
    %54 = vector.extract_strided_slice %34 {offsets = [0, 72], sizes = [8, 8], strides = [1, 1]} : vector<8x96xbf16> to vector<8x8xbf16>
    %55 = vector.extract_strided_slice %34 {offsets = [0, 80], sizes = [8, 8], strides = [1, 1]} : vector<8x96xbf16> to vector<8x8xbf16>
    %56 = vector.extract_strided_slice %34 {offsets = [0, 88], sizes = [8, 8], strides = [1, 1]} : vector<8x96xbf16> to vector<8x8xbf16>
    %57 = vector.shape_cast %53 : vector<8x8xbf16> to vector<1x8x8xbf16>
    %58 = vector.shape_cast %54 : vector<8x8xbf16> to vector<1x8x8xbf16>
    %59 = vector.shape_cast %55 : vector<8x8xbf16> to vector<1x8x8xbf16>
    %60 = vector.shape_cast %56 : vector<8x8xbf16> to vector<1x8x8xbf16>
    %61 = tpu.concatenate %57, %58, %59, %60 in 0 : vector<1x8x8xbf16>, vector<1x8x8xbf16>, vector<1x8x8xbf16>, vector<1x8x8xbf16> -> vector<4x8x8xbf16>
    %cst_16 = arith.constant dense<0.000000e+00> : vector<4x8x8xf32>
    %62 = tpu.matmul %43, %52, %cst_16 {dimension_numbers = #tpu.dot_dimension_numbers<[2], [2], [1], [1], [0, 0, 0, 1, 1, 1], [0], [0]>} : vector<4x8x8xbf16>, vector<4x8x8xbf16>, vector<4x8x8xf32> -> vector<4x8x8xf32>
    %cst_17 = arith.constant dense<0xFF800000> : vector<4x8xf32>
    %63 = vector.multi_reduction <maximumf>, %62, %cst_17 [2] : vector<4x8x8xf32> to vector<4x8xf32>
    %64 = vector.shape_cast %63 : vector<4x8xf32> to vector<4x8x1xf32>
    %65 = vector.broadcast %64 : vector<4x8x1xf32> to vector<4x8x8xf32>
    %66 = arith.subf %62, %65 : vector<4x8x8xf32>
    %67 = math.exp %66 : vector<4x8x8xf32>
    %cst_18 = arith.constant dense<0.000000e+00> : vector<4x8xf32>
    %68 = vector.multi_reduction <add>, %67, %cst_18 [2] : vector<4x8x8xf32> to vector<4x8xf32>
    %69 = vector.shape_cast %68 : vector<4x8xf32> to vector<4x8x1xf32>
    %70 = arith.truncf %67 : vector<4x8x8xf32> to vector<4x8x8xbf16>
    %cst_19 = arith.constant dense<0.000000e+00> : vector<4x8x8xf32>
    %71 = tpu.matmul %70, %61, %cst_19 {dimension_numbers = #tpu.dot_dimension_numbers<[2], [1], [1], [2], [0, 0, 0, 1, 1, 2], [0], [0]>} : vector<4x8x8xbf16>, vector<4x8x8xbf16>, vector<4x8x8xf32> -> vector<4x8x8xf32>
    %72 = tpu.reciprocal %69 {approx = true} : vector<4x8x1xf32> -> vector<4x8x1xf32>
    %73 = vector.broadcast %72 : vector<4x8x1xf32> to vector<4x8x8xf32>
    %74 = arith.mulf %71, %73 : vector<4x8x8xf32>
    %75 = arith.truncf %74 : vector<4x8x8xf32> to vector<4x8x8xbf16>
    %c0_20 = arith.constant 0 : index
    %c0_21 = arith.constant 0 : index
    %c0_22 = arith.constant 0 : index
    %76 = vector.load %arg4[%c0_20, %c0_21, %c0_22] : memref<4x8x32xbf16, #tpu.memory_space<vmem>>, vector<4x8x32xbf16>
    %cst_23 = arith.constant dense<0.000000e+00> : vector<4x8x32xf32>
    %77 = tpu.matmul %75, %76, %cst_23 {dimension_numbers = #tpu.dot_dimension_numbers<[2], [1], [1], [2], [0, 0, 0, 1, 1, 2], [0], [0]>} : vector<4x8x8xbf16>, vector<4x8x32xbf16>, vector<4x8x32xf32> -> vector<4x8x32xf32>
    %cst_24 = arith.constant dense<0.000000e+00> : vector<8x32xf32>
    %78 = vector.multi_reduction <add>, %77, %cst_24 [0] : vector<4x8x32xf32> to vector<8x32xf32>
    %c0_25 = arith.constant 0 : index
    %c0_26 = arith.constant 0 : index
    %79 = vector.load %arg5[%c0_25, %c0_26] : memref<1x32xf32, #tpu.memory_space<vmem>>, vector<1x32xf32>
    %80 = vector.broadcast %79 : vector<1x32xf32> to vector<8x32xf32>
    %81 = arith.addf %78, %80 : vector<8x32xf32>
    %82 = arith.addf %1, %81 : vector<8x32xf32>
    %cst_27 = arith.constant dense<0.000000e+00> : vector<8xf32>
    %83 = vector.multi_reduction <add>, %82, %cst_27 [1] : vector<8x32xf32> to vector<8xf32>
    %84 = vector.shape_cast %83 : vector<8xf32> to vector<8x1xf32>
    %cst_28 = arith.constant 3.200000e+01 : f32
    %85 = vector.broadcast %cst_28 : f32 to vector<8x1xf32>
    %86 = arith.divf %84, %85 : vector<8x1xf32>
    %87 = vector.broadcast %86 : vector<8x1xf32> to vector<8x32xf32>
    %88 = arith.subf %82, %87 : vector<8x32xf32>
    %89 = arith.mulf %88, %88 : vector<8x32xf32>
    %cst_29 = arith.constant dense<0.000000e+00> : vector<8xf32>
    %90 = vector.multi_reduction <add>, %89, %cst_29 [1] : vector<8x32xf32> to vector<8xf32>
    %91 = vector.shape_cast %90 : vector<8xf32> to vector<8x1xf32>
    %cst_30 = arith.constant 0.0322580636 : f32
    %92 = vector.broadcast %cst_30 : f32 to vector<8x1xf32>
    %93 = arith.mulf %91, %92 : vector<8x1xf32>
    %94 = math.sqrt %93 : vector<8x1xf32>
    %cst_31 = arith.constant 9.99999997E-7 : f32
    %95 = vector.broadcast %cst_31 : f32 to vector<8x1xf32>
    %96 = arith.addf %94, %95 : vector<8x1xf32>
    %cst_32 = arith.constant 1.000000e+00 : f32
    %97 = vector.broadcast %cst_32 : f32 to vector<8x1xf32>
    %98 = arith.divf %97, %96 : vector<8x1xf32>
    %99 = vector.broadcast %86 : vector<8x1xf32> to vector<8x32xf32>
    %100 = arith.subf %82, %99 : vector<8x32xf32>
    %101 = vector.broadcast %2 : vector<1x32xf32> to vector<8x32xf32>
    %102 = arith.mulf %101, %100 : vector<8x32xf32>
    %103 = vector.broadcast %98 : vector<8x1xf32> to vector<8x32xf32>
    %104 = arith.mulf %102, %103 : vector<8x32xf32>
    %105 = vector.broadcast %3 : vector<1x32xf32> to vector<8x32xf32>
    %106 = arith.addf %104, %105 : vector<8x32xf32>
    %107 = arith.truncf %106 : vector<8x32xf32> to vector<8x32xbf16>
    %c0_33 = arith.constant 0 : index
    %c0_34 = arith.constant 0 : index
    %108 = vector.load %arg8[%c0_33, %c0_34] : memref<32x64xbf16, #tpu.memory_space<vmem>>, vector<32x64xbf16>
    %cst_35 = arith.constant dense<0.000000e+00> : vector<8x64xf32>
    %109 = tpu.matmul %107, %108, %cst_35 {dimension_numbers = #tpu.dot_dimension_numbers<[1], [0], [0], [1], [0, 0, 1, 1], [], []>} : vector<8x32xbf16>, vector<32x64xbf16>, vector<8x64xf32> -> vector<8x64xf32>
    %c0_36 = arith.constant 0 : index
    %c0_37 = arith.constant 0 : index
    %110 = vector.load %arg9[%c0_36, %c0_37] : memref<1x64xf32, #tpu.memory_space<vmem>>, vector<1x64xf32>
    %111 = vector.broadcast %110 : vector<1x64xf32> to vector<8x64xf32>
    %112 = arith.addf %109, %111 : vector<8x64xf32>
    %cst_38 = arith.constant 0.000000e+00 : f32
    %113 = vector.broadcast %cst_38 : f32 to vector<8x64xf32>
    %114 = arith.maximumf %112, %113 : vector<8x64xf32>
    %115 = arith.truncf %114 : vector<8x64xf32> to vector<8x64xbf16>
    %c0_39 = arith.constant 0 : index
    %c0_40 = arith.constant 0 : index
    %116 = vector.load %arg10[%c0_39, %c0_40] : memref<64x32xbf16, #tpu.memory_space<vmem>>, vector<64x32xbf16>
    %cst_41 = arith.constant dense<0.000000e+00> : vector<8x32xf32>
    %117 = tpu.matmul %115, %116, %cst_41 {dimension_numbers = #tpu.dot_dimension_numbers<[1], [0], [0], [1], [0, 0, 1, 1], [], []>} : vector<8x64xbf16>, vector<64x32xbf16>, vector<8x32xf32> -> vector<8x32xf32>
    %c0_42 = arith.constant 0 : index
    %c0_43 = arith.constant 0 : index
    %118 = vector.load %arg11[%c0_42, %c0_43] : memref<1x32xf32, #tpu.memory_space<vmem>>, vector<1x32xf32>
    %119 = vector.broadcast %118 : vector<1x32xf32> to vector<8x32xf32>
    %120 = arith.addf %117, %119 : vector<8x32xf32>
    %121 = arith.addf %82, %120 : vector<8x32xf32>
    %c0_44 = arith.constant 0 : index
    %c0_45 = arith.constant 0 : index
    %c0_46 = arith.constant 0 : index
    %122 = vector.load %arg12[%c0_44, %c0_45, %c0_46] : memref<1x8x32xf32, #tpu.memory_space<vmem>>, vector<1x8x32xf32>
    %123 = vector.shape_cast %122 : vector<1x8x32xf32> to vector<8x32xf32>
    %124 = vector.shape_cast %121 : vector<8x32xf32> to vector<1x8x32xf32>
    tpu.vector_store %arg12[%c0_44, %c0_45, %c0_46], %124 {strides = array<i32>} : memref<1x8x32xf32, #tpu.memory_space<vmem>>, vector<1x8x32xf32>,
    return
  }
  func.func @transform_0(%arg0: i32) -> (i32, i32, i32) {
    %c0_i32 = arith.constant 0 : i32
    %c0_i32_0 = arith.constant 0 : i32
    %c0_i32_1 = arith.constant 0 : i32
    return %arg0, %c0_i32, %c0_i32_0 : i32, i32, i32
  }
  func.func @transform_1(%arg0: i32) -> (i32, i32) {
    %c0_i32 = arith.constant 0 : i32
    %c0_i32_0 = arith.constant 0 : i32
    %c0_i32_1 = arith.constant 0 : i32
    return %c0_i32, %c0_i32_0 : i32, i32
  }
  func.func @transform_2(%arg0: i32) -> (i32, i32) {
    %c0_i32 = arith.constant 0 : i32
    %c0_i32_0 = arith.constant 0 : i32
    %c0_i32_1 = arith.constant 0 : i32
    return %c0_i32, %c0_i32_0 : i32, i32
  }
  func.func @transform_3(%arg0: i32) -> (i32, i32, i32) {
    %c0_i32 = arith.constant 0 : i32
    %c0_i32_0 = arith.constant 0 : i32
    %c0_i32_1 = arith.constant 0 : i32
    %c0_i32_2 = arith.constant 0 : i32
    return %c0_i32, %c0_i32_0, %c0_i32_1 : i32, i32, i32
  }
  func.func @transform_4(%arg0: i32) -> (i32, i32) {
    %c0_i32 = arith.constant 0 : i32
    %c0_i32_0 = arith.constant 0 : i32
    %c0_i32_1 = arith.constant 0 : i32
    return %c0_i32, %c0_i32_0 : i32, i32
  }
  func.func @transform_5(%arg0: i32) -> (i32, i32) {
    %c0_i32 = arith.constant 0 : i32
    %c0_i32_0 = arith.constant 0 : i32
    %c0_i32_1 = arith.constant 0 : i32
    return %c0_i32, %c0_i32_0 : i32, i32
  }
  func.func @transform_6(%arg0: i32) -> (i32, i32) {
    %c0_i32 = arith.constant 0 : i32
    %c0_i32_0 = arith.constant 0 : i32
    %c0_i32_1 = arith.constant 0 : i32
    return %c0_i32, %c0_i32_0 : i32, i32
  }
  func.func @transform_7(%arg0: i32) -> (i32, i32) {
    %c0_i32 = arith.constant 0 : i32
    %c0_i32_0 = arith.constant 0 : i32
    %c0_i32_1 = arith.constant 0 : i32
    return %c0_i32, %c0_i32_0 : i32, i32
  }
  func.func @transform_8(%arg0: i32) -> (i32, i32) {
    %c0_i32 = arith.constant 0 : i32
    %c0_i32_0 = arith.constant 0 : i32
    %c0_i32_1 = arith.constant 0 : i32
    return %c0_i32, %c0_i32_0 : i32, i32
  }
  func.func @transform_9(%arg0: i32) -> (i32, i32) {
    %c0_i32 = arith.constant 0 : i32
    %c0_i32_0 = arith.constant 0 : i32
    %c0_i32_1 = arith.constant 0 : i32
    return %c0_i32, %c0_i32_0 : i32, i32
  }
  func.func @transform_10(%arg0: i32) -> (i32, i32) {
    %c0_i32 = arith.constant 0 : i32
    %c0_i32_0 = arith.constant 0 : i32
    %c0_i32_1 = arith.constant 0 : i32
    return %c0_i32, %c0_i32_0 : i32, i32
  }
  func.func @transform_11(%arg0: i32) -> (i32, i32, i32) {
    %c0_i32 = arith.constant 0 : i32
    %c0_i32_0 = arith.constant 0 : i32
    %c0_i32_1 = arith.constant 0 : i32
    return %arg0, %c0_i32, %c0_i32_0 : i32, i32, i32
  }
}

</mosaic_0001>

<llo_original>
// kernel: tpu_custom_call.1
$region0: #{tpu_custom_call.1}
  #allocation0 [shape = 'u32[]', space=smem, size = 0x4, offset = 0x4, fixed_abs, tag = 'smem constant byte address 0x4 - core index']
  #allocation1 [shape = 'u32[144,128]{1,0:T(1,128)}', space=vmem, size = 0x12000, scoped, tag = 'internal scratch']
  %s0 = inlined_call_operand.vmem [shape: f32[2,8,32], index: 0, kind: input, shape index: {}]
  %s1 = inlined_call_operand.vmem [shape: bf16[32,96], index: 1, kind: input, shape index: {}]
  %s2 = inlined_call_operand.vmem [shape: f32[1,96], index: 2, kind: input, shape index: {}]
  %s3 = inlined_call_operand.vmem [shape: bf16[4,8,32], index: 3, kind: input, shape index: {}]
  %s4 = inlined_call_operand.vmem [shape: f32[1,32], index: 4, kind: input, shape index: {}]
  %s5 = inlined_call_operand.vmem [shape: f32[1,32], index: 5, kind: input, shape index: {}]
  %s6 = inlined_call_operand.vmem [shape: f32[1,32], index: 6, kind: input, shape index: {}]
  %s7 = inlined_call_operand.hbm [shape: bf16[32,64], index: 7, kind: input, shape index: {}]
  %s8 = inlined_call_operand.vmem [shape: f32[1,64], index: 8, kind: input, shape index: {}]
  %s9 = inlined_call_operand.vmem [shape: bf16[64,32], index: 9, kind: input, shape index: {}]
  %s10 = inlined_call_operand.vmem [shape: f32[1,32], index: 10, kind: input, shape index: {}]
  %s11 = inlined_call_operand.hbm [shape: f32[2,8,32], index: 11, kind: output, shape index: {}]
  %s12 = sld [smem:[#allocation0]]
  $region81: #{tpu_custom_call.1} parent=0
    _
  %s14 = ssub.s32 1, %s12
  %s15 = scalar_select 0, %s14, %s12
  $region1: #{tpu_custom_call.1} parent=0
    #allocation2 [shape = 'u8[8192]{0}', space=vmem, size = 0x2000, scoped, tag = 'input window, operand 7, single buffered']
    #allocation3 [shape = 's32[2]{0}', space=sflag, size = 0x8, scoped, tag = 'scoped memory for tpu_custom_call.1']
    #allocation4 [shape = 's32[2]{0}', space=sflag, size = 0x8, scoped, tag = 'scoped memory for tpu_custom_call.1']
    #allocation5 [shape = 'u8[8192]{0}', space=vmem, size = 0x2000, scoped, tag = 'output window, operand 0']
    %16 = vsyncpa [#allocation3], 0
    %17 = vsyncpa [#allocation4], 0
    %s18 = scalar_lea.sflag [#allocation4], 1
    %19 = vsyncpa %s18, 0
    loop: start=0, step=1, limit=4
    $region2: #{tpu_custom_call.1} parent=1 // loop_pre_header
      _
    $region3: #{tpu_custom_call.1} parent=1 // loop_header
      %s21 = sphi 0, %s25
      %p22 = scmp.ge.s32.totalorder %s21, 4
      %s31 = sphi 0, %s33
      %s34 = sphi 0, %s31
      %s35 = sphi 0, %s34
      %s51 = sphi 0, %s35
      %s55 = sphi 0, %s55
      %s57 = sphi 0, %s55
      %s58 = sphi 0, %s57
      %s72 = sphi 0, %s58
      %s76 = sphi 0, %s76
      %s78 = sphi 0, %s76
      %s79 = sphi 0, %s78
      %s93 = sphi 0, %s79
      %s97 = sphi 0, %s97
      %s99 = sphi 0, %s97
      %s100 = sphi 0, %s99
      %s114 = sphi 0, %s100
      %s118 = sphi 0, %s118
      %s120 = sphi 0, %s118
      %s121 = sphi 0, %s120
      %s135 = sphi 0, %s121
      %s139 = sphi 0, %s139
      %s141 = sphi 0, %s139
      %s142 = sphi 0, %s141
      %s156 = sphi 0, %s142
      %s160 = sphi 0, %s160
      %s162 = sphi 0, %s160
      %s163 = sphi 0, %s162
      %s177 = sphi 0, %s163
      %s181 = sphi 0, %s181
      %s183 = sphi 0, %s181
      %s184 = sphi 0, %s183
      %s198 = sphi 0, %s184
      %s202 = sphi 0, %s202
      %s204 = sphi 0, %s202
      %s205 = sphi 0, %s204
      %s219 = sphi 0, %s205
      %s223 = sphi 0, %s223
      %s225 = sphi 0, %s223
      %s226 = sphi 0, %s225
      %s240 = sphi 0, %s226
      %s244 = sphi 0, %s244
      %s246 = sphi 0, %s244
      %s247 = sphi 0, %s246
      %s261 = sphi 0, %s247
      %s267 = sphi 0, %s269
      %s270 = sphi 0, %s267
      %s271 = sphi 0, %s270
      %s287 = sphi 0, %s271
    $region4: #{tpu_custom_call.1} parent=1 // loop_header_branch
      %24 = sbr.rel (%p22) target = $region8
    $region5: #{tpu_custom_call.1} parent=1 // loop_body
      %s26 = ssub.s32 %s21, 1
      %s27 = ssub.s32 %s21, 2
      %s28 = sadd.s32 %s21, 1
      %s29 = ssub.s32 %s21, %s28
      %p30 = scmp.eq.s32.totalorder %s29, 0
      %s32 = sadd.s32 %s31, 1
      %s33 = scalar_select %p30, %s31, %s32
      %p36 = pneg %p30
      %p37 = scmp.eq.s32.totalorder %s21, 1
      %p38 = por %p36, %p37
      %p39 = scmp.ne.s32.totalorder %s31, %s34
      %p40 = scmp.eq.s32.totalorder %s21, 0
      %p41 = por %p39, %p40
      %p42 = scmp.ne.s32.totalorder %s31, %s34
      %p43 = scmp.eq.s32.totalorder %s26, 1
      %p44 = por %p42, %p43
      %p45 = scmp.ne.s32.totalorder %s34, %s35
      %p46 = scmp.eq.s32.totalorder %s26, 0
      %p47 = por %p45, %p46
      %p48 = scmp.ne.s32.totalorder %s34, %s35
      %p49 = scmp.eq.s32.totalorder %s27, 1
      %p50 = por %p48, %p49
      %p52 = scmp.ne.s32.totalorder %s35, %s51
      %p53 = scmp.eq.s32.totalorder %s27, 0
      %p54 = por %p52, %p53
      %s56 = sadd.s32 %s55, 1
      %p59 = scmp.eq.s32.totalorder %s21, 1
      %p60 = scmp.ne.s32.totalorder %s55, %s57
      %p61 = scmp.eq.s32.totalorder %s21, 0
      %p62 = por %p60, %p61
      %p63 = scmp.ne.s32.totalorder %s55, %s57
      %p64 = scmp.eq.s32.totalorder %s26, 1
      %p65 = por %p63, %p64
      %p66 = scmp.ne.s32.totalorder %s57, %s58
      %p67 = scmp.eq.s32.totalorder %s26, 0
      %p68 = por %p66, %p67
      %p69 = scmp.ne.s32.totalorder %s57, %s58
      %p70 = scmp.eq.s32.totalorder %s27, 1
      %p71 = por %p69, %p70
      %p73 = scmp.ne.s32.totalorder %s58, %s72
      %p74 = scmp.eq.s32.totalorder %s27, 0
      %p75 = por %p73, %p74
      %s77 = sadd.s32 %s76, 1
      %p80 = scmp.eq.s32.totalorder %s21, 1
      %p81 = scmp.ne.s32.totalorder %s76, %s78
      %p82 = scmp.eq.s32.totalorder %s21, 0
      %p83 = por %p81, %p82
      %p84 = scmp.ne.s32.totalorder %s76, %s78
      %p85 = scmp.eq.s32.totalorder %s26, 1
      %p86 = por %p84, %p85
      %p87 = scmp.ne.s32.totalorder %s78, %s79
      %p88 = scmp.eq.s32.totalorder %s26, 0
      %p89 = por %p87, %p88
      %p90 = scmp.ne.s32.totalorder %s78, %s79
      %p91 = scmp.eq.s32.totalorder %s27, 1
      %p92 = por %p90, %p91
      %p94 = scmp.ne.s32.totalorder %s79, %s93
      %p95 = scmp.eq.s32.totalorder %s27, 0
      %p96 = por %p94, %p95
      %s98 = sadd.s32 %s97, 1
      %p101 = scmp.eq.s32.totalorder %s21, 1
      %p102 = scmp.ne.s32.totalorder %s97, %s99
      %p103 = scmp.eq.s32.totalorder %s21, 0
      %p104 = por %p102, %p103
      %p105 = scmp.ne.s32.totalorder %s97, %s99
      %p106 = scmp.eq.s32.totalorder %s26, 1
      %p107 = por %p105, %p106
      %p108 = scmp.ne.s32.totalorder %s99, %s100
      %p109 = scmp.eq.s32.totalorder %s26, 0
      %p110 = por %p108, %p109
      %p111 = scmp.ne.s32.totalorder %s99, %s100
      %p112 = scmp.eq.s32.totalorder %s27, 1
      %p113 = por %p111, %p112
      %p115 = scmp.ne.s32.totalorder %s100, %s114
      %p116 = scmp.eq.s32.totalorder %s27, 0
      %p117 = por %p115, %p116
      %s119 = sadd.s32 %s118, 1
      %p122 = scmp.eq.s32.totalorder %s21, 1
      %p123 = scmp.ne.s32.totalorder %s118, %s120
      %p124 = scmp.eq.s32.totalorder %s21, 0
      %p125 = por %p123, %p124
      %p126 = scmp.ne.s32.totalorder %s118, %s120
      %p127 = scmp.eq.s32.totalorder %s26, 1
      %p128 = por %p126, %p127
      %p129 = scmp.ne.s32.totalorder %s120, %s121
      %p130 = scmp.eq.s32.totalorder %s26, 0
      %p131 = por %p129, %p130
      %p132 = scmp.ne.s32.totalorder %s120, %s121
      %p133 = scmp.eq.s32.totalorder %s27, 1
      %p134 = por %p132, %p133
      %p136 = scmp.ne.s32.totalorder %s121, %s135
      %p137 = scmp.eq.s32.totalorder %s27, 0
      %p138 = por %p136, %p137
      %s140 = sadd.s32 %s139, 1
      %p143 = scmp.eq.s32.totalorder %s21, 1
      %p144 = scmp.ne.s32.totalorder %s139, %s141
      %p145 = scmp.eq.s32.totalorder %s21, 0
      %p146 = por %p144, %p145
      %p147 = scmp.ne.s32.totalorder %s139, %s141
      %p148 = scmp.eq.s32.totalorder %s26, 1
      %p149 = por %p147, %p148
      %p150 = scmp.ne.s32.totalorder %s141, %s142
      %p151 = scmp.eq.s32.totalorder %s26, 0
      %p152 = por %p150, %p151
      %p153 = scmp.ne.s32.totalorder %s141, %s142
      %p154 = scmp.eq.s32.totalorder %s27, 1
      %p155 = por %p153, %p154
      %p157 = scmp.ne.s32.totalorder %s142, %s156
      %p158 = scmp.eq.s32.totalorder %s27, 0
      %p159 = por %p157, %p158
      %s161 = sadd.s32 %s160, 1
      %p164 = scmp.eq.s32.totalorder %s21, 1
      %p165 = scmp.ne.s32.totalorder %s160, %s162
      %p166 = scmp.eq.s32.totalorder %s21, 0
      %p167 = por %p165, %p166
      %p168 = scmp.ne.s32.totalorder %s160, %s162
      %p169 = scmp.eq.s32.totalorder %s26, 1
      %p170 = por %p168, %p169
      %p171 = scmp.ne.s32.totalorder %s162, %s163
      %p172 = scmp.eq.s32.totalorder %s26, 0
      %p173 = por %p171, %p172
      %p174 = scmp.ne.s32.totalorder %s162, %s163
      %p175 = scmp.eq.s32.totalorder %s27, 1
      %p176 = por %p174, %p175
      %p178 = scmp.ne.s32.totalorder %s163, %s177
      %p179 = scmp.eq.s32.totalorder %s27, 0
      %p180 = por %p178, %p179
      %s182 = sadd.s32 %s181, 1
      %p185 = scmp.eq.s32.totalorder %s21, 1
      %p186 = scmp.ne.s32.totalorder %s181, %s183
      %p187 = scmp.eq.s32.totalorder %s21, 0
      %p188 = por %p186, %p187
      %p189 = scmp.ne.s32.totalorder %s181, %s183
      %p190 = scmp.eq.s32.totalorder %s26, 1
      %p191 = por %p189, %p190
      %p192 = scmp.ne.s32.totalorder %s183, %s184
      %p193 = scmp.eq.s32.totalorder %s26, 0
      %p194 = por %p192, %p193
      %p195 = scmp.ne.s32.totalorder %s183, %s184
      %p196 = scmp.eq.s32.totalorder %s27, 1
      %p197 = por %p195, %p196
      %p199 = scmp.ne.s32.totalorder %s184, %s198
      %p200 = scmp.eq.s32.totalorder %s27, 0
      %p201 = por %p199, %p200
      %s203 = sadd.s32 %s202, 1
      %p206 = scmp.eq.s32.totalorder %s21, 1
      %p207 = scmp.ne.s32.totalorder %s202, %s204
      %p208 = scmp.eq.s32.totalorder %s21, 0
      %p209 = por %p207, %p208
      %p210 = scmp.ne.s32.totalorder %s202, %s204
      %p211 = scmp.eq.s32.totalorder %s26, 1
      %p212 = por %p210, %p211
      %p213 = scmp.ne.s32.totalorder %s204, %s205
      %p214 = scmp.eq.s32.totalorder %s26, 0
      %p215 = por %p213, %p214
      %p216 = scmp.ne.s32.totalorder %s204, %s205
      %p217 = scmp.eq.s32.totalorder %s27, 1
      %p218 = por %p216, %p217
      %p220 = scmp.ne.s32.totalorder %s205, %s219
      %p221 = scmp.eq.s32.totalorder %s27, 0
      %p222 = por %p220, %p221
      %s224 = sadd.s32 %s223, 1
      %p227 = scmp.eq.s32.totalorder %s21, 1
      %p228 = scmp.ne.s32.totalorder %s223, %s225
      %p229 = scmp.eq.s32.totalorder %s21, 0
      %p230 = por %p228, %p229
      %p231 = scmp.ne.s32.totalorder %s223, %s225
      %p232 = scmp.eq.s32.totalorder %s26, 1
      %p233 = por %p231, %p232
      %p234 = scmp.ne.s32.totalorder %s225, %s226
      %p235 = scmp.eq.s32.totalorder %s26, 0
      %p236 = por %p234, %p235
      %p237 = scmp.ne.s32.totalorder %s225, %s226
      %p238 = scmp.eq.s32.totalorder %s27, 1
      %p239 = por %p237, %p238
      %p241 = scmp.ne.s32.totalorder %s226, %s240
      %p242 = scmp.eq.s32.totalorder %s27, 0
      %p243 = por %p241, %p242
      %s245 = sadd.s32 %s244, 1
      %p248 = scmp.eq.s32.totalorder %s21, 1
      %p249 = scmp.ne.s32.totalorder %s244, %s246
      %p250 = scmp.eq.s32.totalorder %s21, 0
      %p251 = por %p249, %p250
      %p252 = scmp.ne.s32.totalorder %s244, %s246
      %p253 = scmp.eq.s32.totalorder %s26, 1
      %p254 = por %p252, %p253
      %p255 = scmp.ne.s32.totalorder %s246, %s247
      %p256 = scmp.eq.s32.totalorder %s26, 0
      %p257 = por %p255, %p256
      %p258 = scmp.ne.s32.totalorder %s246, %s247
      %p259 = scmp.eq.s32.totalorder %s27, 1
      %p260 = por %p258, %p259
      %p262 = scmp.ne.s32.totalorder %s247, %s261
      %p263 = scmp.eq.s32.totalorder %s27, 0
      %p264 = por %p262, %p263
      %s265 = ssub.s32 %s21, %s28
      %p266 = scmp.eq.s32.totalorder %s265, 0
      %s268 = sadd.s32 %s267, 1
      %s269 = scalar_select %p266, %s267, %s268
      %p272 = pneg %p266
      %p273 = scmp.eq.s32.totalorder %s21, 1
      %p274 = por %p272, %p273
      %p275 = scmp.ne.s32.totalorder %s267, %s270
      %p276 = scmp.eq.s32.totalorder %s21, 0
      %p277 = por %p275, %p276
      %p278 = scmp.ne.s32.totalorder %s267, %s270
      %p279 = scmp.eq.s32.totalorder %s26, 1
      %p280 = por %p278, %p279
      %p281 = scmp.ne.s32.totalorder %s270, %s271
      %p282 = scmp.eq.s32.totalorder %s26, 0
      %p283 = por %p281, %p282
      %p284 = scmp.ne.s32.totalorder %s270, %s271
      %p285 = scmp.eq.s32.totalorder %s27, 1
      %p286 = por %p284, %p285
      %p288 = scmp.ne.s32.totalorder %s271, %s287
      %p289 = scmp.eq.s32.totalorder %s27, 0
      %p290 = por %p288, %p289
      %p291 = scmp.le.s32.totalorder 1, %s21
      %p292 = scmp.lt.s32.totalorder %s21, 3
      %p293 = pnand %p291, %p292
      %p294 = pneg %p293
      // Predicated region
      $region9: #{tpu_custom_call.1} parent=5 // pred_check
        _
      $region10: #{tpu_custom_call.1} parent=5 // pred_check_branch
        %296 = sbr.rel (%p293) target = $region12
      $region11: #{tpu_custom_call.1} parent=5 // pred_region
        %s297 = ssub.s32 %s21, 1
        // Predicated region
        $region13: #{tpu_custom_call.1} parent=11 // pred_check
          %p298 = pneg %p68
        $region14: #{tpu_custom_call.1} parent=11 // pred_check_branch
          %300 = sbr.rel (%p298) target = $region16
        $region15: #{tpu_custom_call.1} parent=11 // pred_region
          _
        $region16: #{tpu_custom_call.1} parent=11 // pred_fallthru
          _
        // Predicated region
        $region17: #{tpu_custom_call.1} parent=11 // pred_check
          %p301 = pneg %p89
        $region18: #{tpu_custom_call.1} parent=11 // pred_check_branch
          %303 = sbr.rel (%p301) target = $region20
        $region19: #{tpu_custom_call.1} parent=11 // pred_region
          _
        $region20: #{tpu_custom_call.1} parent=11 // pred_fallthru
          _
        // Predicated region
        $region21: #{tpu_custom_call.1} parent=11 // pred_check
          %p304 = pneg %p110
        $region22: #{tpu_custom_call.1} parent=11 // pred_check_branch
          %306 = sbr.rel (%p304) target = $region24
        $region23: #{tpu_custom_call.1} parent=11 // pred_region
          _
        $region24: #{tpu_custom_call.1} parent=11 // pred_fallthru
          _
        // Predicated region
        $region25: #{tpu_custom_call.1} parent=11 // pred_check
          %p307 = pneg %p131
        $region26: #{tpu_custom_call.1} parent=11 // pred_check_branch
          %309 = sbr.rel (%p307) target = $region28
        $region27: #{tpu_custom_call.1} parent=11 // pred_region
          _
        $region28: #{tpu_custom_call.1} parent=11 // pred_fallthru
          _
        // Predicated region
        $region29: #{tpu_custom_call.1} parent=11 // pred_check
          %p310 = pneg %p152
        $region30: #{tpu_custom_call.1} parent=11 // pred_check_branch
          %312 = sbr.rel (%p310) target = $region32
        $region31: #{tpu_custom_call.1} parent=11 // pred_region
          _
        $region32: #{tpu_custom_call.1} parent=11 // pred_fallthru
          _
        // Predicated region
        $region33: #{tpu_custom_call.1} parent=11 // pred_check
          %p313 = pneg %p173
        $region34: #{tpu_custom_call.1} parent=11 // pred_check_branch
          %315 = sbr.rel (%p313) target = $region36
        $region35: #{tpu_custom_call.1} parent=11 // pred_region
          _
        $region36: #{tpu_custom_call.1} parent=11 // pred_fallthru
          _
        // Predicated region
        $region37: #{tpu_custom_call.1} parent=11 // pred_check
          %p316 = pneg %p194
        $region38: #{tpu_custom_call.1} parent=11 // pred_check_branch
          %318 = sbr.rel (%p316) target = $region40
        $region39: #{tpu_custom_call.1} parent=11 // pred_region
          %s320 = ssub.s32 256, 256
          %321 = vsyncadd [#allocation3], %s320
          %s322 = sshll.u32 [#allocation2], 4
          %s323 = int_to_ptr.vmem [resolvable:$true] %s322
          %328 = dma.hbm_to_vmem [thread:$0]  %s7, 256, %s323, [#allocation3], 64, 64, 4
        $region40: #{tpu_custom_call.1} parent=11 // pred_fallthru
          _
        // Predicated region
        $region41: #{tpu_custom_call.1} parent=11 // pred_check
          %p329 = pneg %p215
        $region42: #{tpu_custom_call.1} parent=11 // pred_check_branch
          %331 = sbr.rel (%p329) target = $region44
        $region43: #{tpu_custom_call.1} parent=11 // pred_region
          _
        $region44: #{tpu_custom_call.1} parent=11 // pred_fallthru
          _
        // Predicated region
        $region45: #{tpu_custom_call.1} parent=11 // pred_check
          %p332 = pneg %p236
        $region46: #{tpu_custom_call.1} parent=11 // pred_check_branch
          %334 = sbr.rel (%p332) target = $region48
        $region47: #{tpu_custom_call.1} parent=11 // pred_region
          _
        $region48: #{tpu_custom_call.1} parent=11 // pred_fallthru
          _
        // Predicated region
        $region49: #{tpu_custom_call.1} parent=11 // pred_check
          %p335 = pneg %p257
        $region50: #{tpu_custom_call.1} parent=11 // pred_check_branch
          %337 = sbr.rel (%p335) target = $region52
        $region51: #{tpu_custom_call.1} parent=11 // pred_region
          _
        $region52: #{tpu_custom_call.1} parent=11 // pred_fallthru
          _
      $region12: #{tpu_custom_call.1} parent=5 // pred_fallthru
        _
      %p338 = scmp.lt.s32.totalorder %s21, 2
      // Predicated region
      $region53: #{tpu_custom_call.1} parent=5 // pred_check
        %p339 = pneg %p338
      $region54: #{tpu_custom_call.1} parent=5 // pred_check_branch
        %341 = sbr.rel (%p339) target = $region56
      $region55: #{tpu_custom_call.1} parent=5 // pred_region
        // Predicated region
        $region57: #{tpu_custom_call.1} parent=55 // pred_check
          %p342 = pneg %p41
        $region58: #{tpu_custom_call.1} parent=55 // pred_check_branch
          %344 = sbr.rel (%p342) target = $region60
        $region59: #{tpu_custom_call.1} parent=55 // pred_region
          %p345 = scmp.lt.s32.totalorder %s21, 1
          %s346 = scalar_select %p345, %s21, 1
          %s347 = smul.addr %s346, 8
          %s348 = scalar_lea.vmem %s0, %s347
        $region60: #{tpu_custom_call.1} parent=55 // pred_fallthru
          _
      $region56: #{tpu_custom_call.1} parent=5 // pred_fallthru
        _
      %p349 = scmp.le.s32.totalorder 1, %s21
      %p350 = scmp.lt.s32.totalorder %s21, 3
      %p351 = pnand %p349, %p350
      %p352 = pneg %p351
      // Predicated region
      $region61: #{tpu_custom_call.1} parent=5 // pred_check
        _
      $region62: #{tpu_custom_call.1} parent=5 // pred_check_branch
        %354 = sbr.rel (%p351) target = $region64
      $region63: #{tpu_custom_call.1} parent=5 // pred_region
        %s355 = ssub.s32 %s21, 1
        // Predicated region
        $region65: #{tpu_custom_call.1} parent=63 // pred_check
          %p356 = pneg %p194
        $region66: #{tpu_custom_call.1} parent=63 // pred_check_branch
          %358 = sbr.rel (%p356) target = $region68
        $region67: #{tpu_custom_call.1} parent=63 // pred_region
          %359 = dma.done [#allocation3], 256
        $region68: #{tpu_custom_call.1} parent=63 // pred_fallthru
          _
        %p360 = scmp.lt.s32.totalorder %s26, 1
        %s361 = scalar_select %p360, %s26, 1
        %s362 = smul.addr %s361, 8
        %s363 = scalar_lea.vmem %s0, %s362
        %p364 = pneg %p47
        %p365 = pneg %p44
        %p366 = pneg %p68
        %p367 = pneg %p65
        %p368 = pneg %p89
        %p369 = pneg %p86
        %p370 = pneg %p110
        %p371 = pneg %p107
        %p372 = pneg %p131
        %p373 = pneg %p128
        %p374 = pneg %p152
        %p375 = pneg %p149
        %p376 = pneg %p173
        %p377 = pneg %p170
        %p378 = pneg %p194
        %p379 = pneg %p191
        %p380 = pneg %p215
        %p381 = pneg %p212
        %p382 = pneg %p236
        %p383 = pneg %p233
        %p384 = pneg %p257
        %p385 = pneg %p254
        %p386 = pneg %p283
        %p387 = pneg %p280
        %s388 = sand.u32 %s270, 1
        %s389 = scalar_lea.sflag [#allocation4], %s388
        %s390 = sand.u32 %s270, 1
        %s391 = smul.addr %s390, 8
        %s392 = scalar_lea.vmem [#allocation5], %s391
        %p393 = scmp.lt.s32.totalorder %s26, 1
        %s394 = scalar_select %p393, %s26, 1
        %s395 = smul.addr %s394, 8
        %s396 = scalar_lea.vmem %s0, %s395
        %v398 = vld [vmem:[%s396] sm:$0xff]
        %v399 = vld [vmem:[%s5] sm:$0x1]
        %v400 = vld [vmem:[%s6] sm:$0x1]
        %vm401 = vcmask 261120
        %v402 = vsel %vm401, %v398, 0.0
        %403 = vadd.xlane.f32.xlu0 %v402
        %v404 = vpop.xlane.xlu0 %403
        %v405 = vrcp.pop 32.0
        %v406 = vmul.f32 %v404, %v405
        %v407 = vsub.f32 %v398, %v406
        %v408 = vmul.f32 %v407, %v407
        %v409 = vsel %vm401, %v408, 0.0
        %410 = vadd.xlane.f32.xlu0 %v409
        %v411 = vpop.xlane.xlu0 %410
        %v412 = vmul.f32 %v411, 0.032258064
        %v413 = vrsqrt.pop %v412
        %v414 = vmul.f32 %v412, %v413
        %vm415 = vcmp.eq.f32.partialorder %v412, inf
        %v416 = vsel %vm415, %v412, %v414
        %vm417 = vcmp.eq.f32.partialorder %v412, 0.0
        %v418 = vand.u32 %v412, 2147483648
        %v419 = vsel %vm417, %v418, %v416
        %v420 = vadd.f32 %v419, 1e-06
        %v421 = vrcp.pop %v420
        %v422 = vmul.f32 1.0, %v421
        %v424 = vlaneseq
        %v425 = vshrl.u32 %v424, 7
        %v426 = vsub.s32 0, %v425
        %v427 = vrot.slane %v399, %v426
        %v429 = vmul.f32 %v427, %v407
        %v430 = vmul.f32 %v429, %v422
        %v432 = vlaneseq
        %v433 = vshrl.u32 %v432, 7
        %v434 = vsub.s32 0, %v433
        %v435 = vrot.slane %v400, %v434
        %v437 = vadd.f32 %v430, %v435
        %v438 = vpack.c.bf16 %v437, %v437
        %v439 = vld [vmem:[%s1] sm:$0xf]
        %v440 = vld [vmem:[%s1 + $0x4] sm:$0xf]
        %v441 = vld [vmem:[%s1 + $0x8] sm:$0xf]
        %v442 = vld [vmem:[%s1 + $0xc] sm:$0xf]
        %v443 = vld [vmem:[%s2] sm:$0x1]
        %v445 = vlaneseq
        %v446 = vshrl.u32 %v445, 7
        %v447 = vsub.s32 0, %v446
        %v448 = vrot.slane %v443, %v447
        %v454 = vunpack.c.l.b16 %v439
        %v455 = vunpack.c.l.b16 %v440
        %v456 = vunpack.c.l.b16 %v441
        %v457 = vunpack.c.l.b16 %v442
        %v458 = vpack.c.b16 %v455, %v454
        %v459 = vpack.c.b16 %v457, %v456
        %v463 = vsel %vm401, %v438, 0
        %465 = vmatprep.subr.bf16.mxu0 0
        %466 = vmatpush1.bf16.msra.mxu0 %v458
        %467 = vmatprep.subr.bf16.mxu0 0
        %468 = vmatpush1.bf16.msra.mxu0 %v459
        %469 = vmatprep.subr.bf16.mxu0 0
        %470 = vmatpush1.bf16.msra.mxu0 0
        %471 = vmatprep.subr.bf16.mxu0 0
        %472 = vmatpush1.bf16.msra.mxu0 0
        %473 = vmatprep.subr.bf16.mxu0 0
        %474 = vmatpush1.bf16.msra.mxu0 0
        %475 = vmatprep.subr.bf16.mxu0 0
        %476 = vmatpush1.bf16.msra.mxu0 0
        %477 = vmatprep.subr.bf16.mxu0 0
        %478 = vmatpush1.bf16.msra.mxu0 0
        %479 = vmatprep.subr.bf16.mxu0 0
        %480 = vmatpush1.bf16.msra.mxu0 0
        %481 = vmatprep.subr.bf16.mxu0 0
        %482 = vmatpush1.bf16.msra.mxu0 0
        %483 = vmatprep.subr.bf16.mxu0 0
        %484 = vmatpush1.bf16.msra.mxu0 0
        %485 = vmatprep.subr.bf16.mxu0 0
        %486 = vmatpush1.bf16.msra.mxu0 0
        %487 = vmatprep.subr.bf16.mxu0 0
        %488 = vmatpush1.bf16.msra.mxu0 0
        %489 = vmatprep.subr.bf16.mxu0 0
        %490 = vmatpush1.bf16.msra.mxu0 0
        %491 = vmatprep.subr.bf16.mxu0 0
        %492 = vmatpush1.bf16.msra.mxu0 0
        %493 = vmatprep.subr.bf16.mxu0 0
        %494 = vmatpush1.bf16.msra.mxu0 0
        %495 = vmatprep.subr.bf16.mxu0 0
        %496 = vmatpush1.bf16.msra.mxu0 0
        %497 = vmatprep.mubr.bf16.mxu0 0
        %498 = vmatmul.mubr.bf16.gmra.mrb[0].mxu0 %v463
        %v499 = vpop.f32.mrb[0].mxu0
        %v500 = vadd.f32 %v448, %v499
        %v501 = vpop.f32.mrb[0].mxu0
        %v502 = vpop.f32.mrb[0].mxu0
        %v503 = vpop.f32.mrb[0].mxu0
        %504 = vdwg.mxu0
        %v505 = vpack.c.bf16 %v500, %v500
        %507 = vrot.lane.b32.xlu0 %v505, 120
        %v508 = vpop.permute.xlu0 %507
        %509 = vrot.lane.b32.xlu0 %v505, 112
        %v510 = vpop.permute.xlu0 %509
        %511 = vrot.lane.b32.xlu0 %v505, 104
        %v512 = vpop.permute.xlu0 %511
        %513 = vrot.lane.b32.xlu0 %v505, 96
        %v514 = vpop.permute.xlu0 %513
        %vm515 = vcmask 64512
        %v517 = vsel %vm515, %v505, 0
        %v520 = vsel %vm515, %v514, 0
        %522 = vmatprep.subr.bf16.mxu0 0
        %523 = vmatpush1.bf16.xpose.msra.mxu0 %v520
        %524 = vmatprep.subr.bf16.mxu0 0
        %525 = vmatpush1.bf16.xpose.msra.mxu0 0
        %526 = vmatprep.subr.bf16.mxu0 0
        %527 = vmatpush1.bf16.xpose.msra.mxu0 0
        %528 = vmatprep.subr.bf16.mxu0 0
        %529 = vmatpush1.bf16.xpose.msra.mxu0 0
        %530 = vmatprep.subr.bf16.mxu0 0
        %531 = vmatpush1.bf16.xpose.msra.mxu0 0
        %532 = vmatprep.subr.bf16.mxu0 0
        %533 = vmatpush1.bf16.xpose.msra.mxu0 0
        %534 = vmatprep.subr.bf16.mxu0 0
        %535 = vmatpush1.bf16.xpose.msra.mxu0 0
        %536 = vmatprep.subr.bf16.mxu0 0
        %537 = vmatpush1.bf16.xpose.msra.mxu0 0
        %538 = vmatprep.subr.bf16.mxu0 0
        %539 = vmatpush1.bf16.xpose.msra.mxu0 0
        %540 = vmatprep.subr.bf16.mxu0 0
        %541 = vmatpush1.bf16.xpose.msra.mxu0 0
        %542 = vmatprep.subr.bf16.mxu0 0
        %543 = vmatpush1.bf16.xpose.msra.mxu0 0
        %544 = vmatprep.subr.bf16.mxu0 0
        %545 = vmatpush1.bf16.xpose.msra.mxu0 0
        %546 = vmatprep.subr.bf16.mxu0 0
        %547 = vmatpush1.bf16.xpose.msra.mxu0 0
        %548 = vmatprep.subr.bf16.mxu0 0
        %549 = vmatpush1.bf16.xpose.msra.mxu0 0
        %550 = vmatprep.subr.bf16.mxu0 0
        %551 = vmatpush1.bf16.xpose.msra.mxu0 0
        %552 = vmatprep.subr.bf16.mxu0 0
        %553 = vmatpush1.bf16.xpose.msra.mxu0 0
        %554 = vmatprep.mubr.bf16.mxu0 0
        %555 = vmatmul.mubr.bf16.gmra.mrb[0].mxu0 %v517
        %v556 = vpop.f32.mrb[0].mxu0
        %v557 = vadd.f32 0.0, %v556
        %v558 = vpop.f32.mrb[0].mxu0
        %v559 = vpop.f32.mrb[0].mxu0
        %v560 = vpop.f32.mrb[0].mxu0
        %561 = vdwg.mxu0
        %562 = vrot.lane.b32.xlu0 %v508, 96
        %v563 = vpop.permute.xlu0 %562
        %v565 = vsel %vm515, %v508, 0
        %v568 = vsel %vm515, %v563, 0
        %570 = vmatprep.subr.bf16.mxu0 0
        %571 = vmatpush1.bf16.xpose.msra.mxu0 %v568
        %572 = vmatprep.subr.bf16.mxu0 0
        %573 = vmatpush1.bf16.xpose.msra.mxu0 0
        %574 = vmatprep.subr.bf16.mxu0 0
        %575 = vmatpush1.bf16.xpose.msra.mxu0 0
        %576 = vmatprep.subr.bf16.mxu0 0
        %577 = vmatpush1.bf16.xpose.msra.mxu0 0
        %578 = vmatprep.subr.bf16.mxu0 0
        %579 = vmatpush1.bf16.xpose.msra.mxu0 0
        %580 = vmatprep.subr.bf16.mxu0 0
        %581 = vmatpush1.bf16.xpose.msra.mxu0 0
        %582 = vmatprep.subr.bf16.mxu0 0
        %583 = vmatpush1.bf16.xpose.msra.mxu0 0
        %584 = vmatprep.subr.bf16.mxu0 0
        %585 = vmatpush1.bf16.xpose.msra.mxu0 0
        %586 = vmatprep.subr.bf16.mxu0 0
        %587 = vmatpush1.bf16.xpose.msra.mxu0 0
        %588 = vmatprep.subr.bf16.mxu0 0
        %589 = vmatpush1.bf16.xpose.msra.mxu0 0
        %590 = vmatprep.subr.bf16.mxu0 0
        %591 = vmatpush1.bf16.xpose.msra.mxu0 0
        %592 = vmatprep.subr.bf16.mxu0 0
        %593 = vmatpush1.bf16.xpose.msra.mxu0 0
        %594 = vmatprep.subr.bf16.mxu0 0
        %595 = vmatpush1.bf16.xpose.msra.mxu0 0
        %596 = vmatprep.subr.bf16.mxu0 0
        %597 = vmatpush1.bf16.xpose.msra.mxu0 0
        %598 = vmatprep.subr.bf16.mxu0 0
        %599 = vmatpush1.bf16.xpose.msra.mxu0 0
        %600 = vmatprep.subr.bf16.mxu0 0
        %601 = vmatpush1.bf16.xpose.msra.mxu0 0
        %602 = vmatprep.mubr.bf16.mxu0 0
        %603 = vmatmul.mubr.bf16.gmra.mrb[0].mxu0 %v565
        %v604 = vpop.f32.mrb[0].mxu0
        %v605 = vadd.f32 0.0, %v604
        %v606 = vpop.f32.mrb[0].mxu0
        %v607 = vpop.f32.mrb[0].mxu0
        %v608 = vpop.f32.mrb[0].mxu0
        %609 = vdwg.mxu0
        %610 = vrot.lane.b32.xlu0 %v510, 96
        %v611 = vpop.permute.xlu0 %610
        %v613 = vsel %vm515, %v510, 0
        %v616 = vsel %vm515, %v611, 0
        %618 = vmatprep.subr.bf16.mxu0 0
        %619 = vmatpush1.bf16.xpose.msra.mxu0 %v616
        %620 = vmatprep.subr.bf16.mxu0 0
        %621 = vmatpush1.bf16.xpose.msra.mxu0 0
        %622 = vmatprep.subr.bf16.mxu0 0
        %623 = vmatpush1.bf16.xpose.msra.mxu0 0
        %624 = vmatprep.subr.bf16.mxu0 0
        %625 = vmatpush1.bf16.xpose.msra.mxu0 0
        %626 = vmatprep.subr.bf16.mxu0 0
        %627 = vmatpush1.bf16.xpose.msra.mxu0 0
        %628 = vmatprep.subr.bf16.mxu0 0
        %629 = vmatpush1.bf16.xpose.msra.mxu0 0
        %630 = vmatprep.subr.bf16.mxu0 0
        %631 = vmatpush1.bf16.xpose.msra.mxu0 0
        %632 = vmatprep.subr.bf16.mxu0 0
        %633 = vmatpush1.bf16.xpose.msra.mxu0 0
        %634 = vmatprep.subr.bf16.mxu0 0
        %635 = vmatpush1.bf16.xpose.msra.mxu0 0
        %636 = vmatprep.subr.bf16.mxu0 0
        %637 = vmatpush1.bf16.xpose.msra.mxu0 0
        %638 = vmatprep.subr.bf16.mxu0 0
        %639 = vmatpush1.bf16.xpose.msra.mxu0 0
        %640 = vmatprep.subr.bf16.mxu0 0
        %641 = vmatpush1.bf16.xpose.msra.mxu0 0
        %642 = vmatprep.subr.bf16.mxu0 0
        %643 = vmatpush1.bf16.xpose.msra.mxu0 0
        %644 = vmatprep.subr.bf16.mxu0 0
        %645 = vmatpush1.bf16.xpose.msra.mxu0 0
        %646 = vmatprep.subr.bf16.mxu0 0
        %647 = vmatpush1.bf16.xpose.msra.mxu0 0
        %648 = vmatprep.subr.bf16.mxu0 0
        %649 = vmatpush1.bf16.xpose.msra.mxu0 0
        %650 = vmatprep.mubr.bf16.mxu0 0
        %651 = vmatmul.mubr.bf16.gmra.mrb[0].mxu0 %v613
        %v652 = vpop.f32.mrb[0].mxu0
        %v653 = vadd.f32 0.0, %v652
        %v654 = vpop.f32.mrb[0].mxu0
        %v655 = vpop.f32.mrb[0].mxu0
        %v656 = vpop.f32.mrb[0].mxu0
        %657 = vdwg.mxu0
        %658 = vrot.lane.b32.xlu0 %v512, 96
        %v659 = vpop.permute.xlu0 %658
        %v661 = vsel %vm515, %v512, 0
        %v664 = vsel %vm515, %v659, 0
        %666 = vmatprep.subr.bf16.mxu0 0
        %667 = vmatpush1.bf16.xpose.msra.mxu0 %v664
        %668 = vmatprep.subr.bf16.mxu0 0
        %669 = vmatpush1.bf16.xpose.msra.mxu0 0
        %670 = vmatprep.subr.bf16.mxu0 0
        %671 = vmatpush1.bf16.xpose.msra.mxu0 0
        %672 = vmatprep.subr.bf16.mxu0 0
        %673 = vmatpush1.bf16.xpose.msra.mxu0 0
        %674 = vmatprep.subr.bf16.mxu0 0
        %675 = vmatpush1.bf16.xpose.msra.mxu0 0
        %676 = vmatprep.subr.bf16.mxu0 0
        %677 = vmatpush1.bf16.xpose.msra.mxu0 0
        %678 = vmatprep.subr.bf16.mxu0 0
        %679 = vmatpush1.bf16.xpose.msra.mxu0 0
        %680 = vmatprep.subr.bf16.mxu0 0
        %681 = vmatpush1.bf16.xpose.msra.mxu0 0
        %682 = vmatprep.subr.bf16.mxu0 0
        %683 = vmatpush1.bf16.xpose.msra.mxu0 0
        %684 = vmatprep.subr.bf16.mxu0 0
        %685 = vmatpush1.bf16.xpose.msra.mxu0 0
        %686 = vmatprep.subr.bf16.mxu0 0
        %687 = vmatpush1.bf16.xpose.msra.mxu0 0
        %688 = vmatprep.subr.bf16.mxu0 0
        %689 = vmatpush1.bf16.xpose.msra.mxu0 0
        %690 = vmatprep.subr.bf16.mxu0 0
        %691 = vmatpush1.bf16.xpose.msra.mxu0 0
        %692 = vmatprep.subr.bf16.mxu0 0
        %693 = vmatpush1.bf16.xpose.msra.mxu0 0
        %694 = vmatprep.subr.bf16.mxu0 0
        %695 = vmatpush1.bf16.xpose.msra.mxu0 0
        %696 = vmatprep.subr.bf16.mxu0 0
        %697 = vmatpush1.bf16.xpose.msra.mxu0 0
        %698 = vmatprep.mubr.bf16.mxu0 0
        %699 = vmatmul.mubr.bf16.gmra.mrb[0].mxu0 %v661
        %v700 = vpop.f32.mrb[0].mxu0
        %v701 = vadd.f32 0.0, %v700
        %v702 = vpop.f32.mrb[0].mxu0
        %v703 = vpop.f32.mrb[0].mxu0
        %v704 = vpop.f32.mrb[0].mxu0
        %705 = vdwg.mxu0
        %v706 = vsel %vm515, %v557, -inf
        %707 = vmax.xlane.f32.xlu0 %v706
        %v708 = vpop.xlane.xlu0 %707
        %v709 = vsel %vm515, %v605, -inf
        %710 = vmax.xlane.f32.xlu0 %v709
        %v711 = vpop.xlane.xlu0 %710
        %v712 = vsel %vm515, %v653, -inf
        %713 = vmax.xlane.f32.xlu0 %v712
        %v714 = vpop.xlane.xlu0 %713
        %v715 = vsel %vm515, %v701, -inf
        %716 = vmax.xlane.f32.xlu0 %v715
        %v717 = vpop.xlane.xlu0 %716
        %v718 = vsub.f32 %v557, %v708
        %v719 = vsub.f32 %v605, %v711
        %v720 = vsub.f32 %v653, %v714
        %v721 = vsub.f32 %v701, %v717
        %v722 = vmul.f32 %v718, 1.442695
        %v723 = vpow.pop %v722
        %v724 = vmul.f32 %v719, 1.442695
        %v725 = vpow.pop %v724
        %v726 = vmul.f32 %v720, 1.442695
        %v727 = vpow.pop %v726
        %v728 = vmul.f32 %v721, 1.442695
        %v729 = vpow.pop %v728
        %v730 = vsel %vm515, %v723, 0.0
        %731 = vadd.xlane.f32.xlu0 %v730
        %v732 = vpop.xlane.xlu0 %731
        %v733 = vsel %vm515, %v725, 0.0
        %734 = vadd.xlane.f32.xlu0 %v733
        %v735 = vpop.xlane.xlu0 %734
        %v736 = vsel %vm515, %v727, 0.0
        %737 = vadd.xlane.f32.xlu0 %v736
        %v738 = vpop.xlane.xlu0 %737
        %v739 = vsel %vm515, %v729, 0.0
        %740 = vadd.xlane.f32.xlu0 %v739
        %v741 = vpop.xlane.xlu0 %740
        %v742 = vpack.c.bf16 %v723, %v723
        %v743 = vpack.c.bf16 %v725, %v725
        %v744 = vpack.c.bf16 %v727, %v727
        %v745 = vpack.c.bf16 %v729, %v729
        %746 = vrot.lane.b32.xlu0 %v505, 64
        %v747 = vpop.permute.xlu0 %746
        %v749 = vsel %vm515, %v742, 0
        %vm751 = vcmask 1043456
        %v753 = vsel %vm751, %v747, 0
        %755 = vmatprep.subr.bf16.mxu0 0
        %756 = vmatpush1.bf16.msra.mxu0 %v753
        %757 = vmatprep.subr.bf16.mxu0 0
        %758 = vmatpush1.bf16.msra.mxu0 0
        %759 = vmatprep.subr.bf16.mxu0 0
        %760 = vmatpush1.bf16.msra.mxu0 0
        %761 = vmatprep.subr.bf16.mxu0 0
        %762 = vmatpush1.bf16.msra.mxu0 0
        %763 = vmatprep.subr.bf16.mxu0 0
        %764 = vmatpush1.bf16.msra.mxu0 0
        %765 = vmatprep.subr.bf16.mxu0 0
        %766 = vmatpush1.bf16.msra.mxu0 0
        %767 = vmatprep.subr.bf16.mxu0 0
        %768 = vmatpush1.bf16.msra.mxu0 0
        %769 = vmatprep.subr.bf16.mxu0 0
        %770 = vmatpush1.bf16.msra.mxu0 0
        %771 = vmatprep.subr.bf16.mxu0 0
        %772 = vmatpush1.bf16.msra.mxu0 0
        %773 = vmatprep.subr.bf16.mxu0 0
        %774 = vmatpush1.bf16.msra.mxu0 0
        %775 = vmatprep.subr.bf16.mxu0 0
        %776 = vmatpush1.bf16.msra.mxu0 0
        %777 = vmatprep.subr.bf16.mxu0 0
        %778 = vmatpush1.bf16.msra.mxu0 0
        %779 = vmatprep.subr.bf16.mxu0 0
        %780 = vmatpush1.bf16.msra.mxu0 0
        %781 = vmatprep.subr.bf16.mxu0 0
        %782 = vmatpush1.bf16.msra.mxu0 0
        %783 = vmatprep.subr.bf16.mxu0 0
        %784 = vmatpush1.bf16.msra.mxu0 0
        %785 = vmatprep.subr.bf16.mxu0 0
        %786 = vmatpush1.bf16.msra.mxu0 0
        %787 = vmatprep.mubr.bf16.mxu0 0
        %788 = vmatmul.mubr.bf16.gmra.mrb[0].mxu0 %v749
        %v789 = vpop.f32.mrb[0].mxu0
        %v790 = vadd.f32 0.0, %v789
        %v791 = vpop.f32.mrb[0].mxu0
        %v792 = vpop.f32.mrb[0].mxu0
        %v793 = vpop.f32.mrb[0].mxu0
        %794 = vdwg.mxu0
        %795 = vrot.lane.b32.xlu0 %v508, 64
        %v796 = vpop.permute.xlu0 %795
        %v798 = vsel %vm515, %v743, 0
        %v801 = vsel %vm751, %v796, 0
        %803 = vmatprep.subr.bf16.mxu0 0
        %804 = vmatpush1.bf16.msra.mxu0 %v801
        %805 = vmatprep.subr.bf16.mxu0 0
        %806 = vmatpush1.bf16.msra.mxu0 0
        %807 = vmatprep.subr.bf16.mxu0 0
        %808 = vmatpush1.bf16.msra.mxu0 0
        %809 = vmatprep.subr.bf16.mxu0 0
        %810 = vmatpush1.bf16.msra.mxu0 0
        %811 = vmatprep.subr.bf16.mxu0 0
        %812 = vmatpush1.bf16.msra.mxu0 0
        %813 = vmatprep.subr.bf16.mxu0 0
        %814 = vmatpush1.bf16.msra.mxu0 0
        %815 = vmatprep.subr.bf16.mxu0 0
        %816 = vmatpush1.bf16.msra.mxu0 0
        %817 = vmatprep.subr.bf16.mxu0 0
        %818 = vmatpush1.bf16.msra.mxu0 0
        %819 = vmatprep.subr.bf16.mxu0 0
        %820 = vmatpush1.bf16.msra.mxu0 0
        %821 = vmatprep.subr.bf16.mxu0 0
        %822 = vmatpush1.bf16.msra.mxu0 0
        %823 = vmatprep.subr.bf16.mxu0 0
        %824 = vmatpush1.bf16.msra.mxu0 0
        %825 = vmatprep.subr.bf16.mxu0 0
        %826 = vmatpush1.bf16.msra.mxu0 0
        %827 = vmatprep.subr.bf16.mxu0 0
        %828 = vmatpush1.bf16.msra.mxu0 0
        %829 = vmatprep.subr.bf16.mxu0 0
        %830 = vmatpush1.bf16.msra.mxu0 0
        %831 = vmatprep.subr.bf16.mxu0 0
        %832 = vmatpush1.bf16.msra.mxu0 0
        %833 = vmatprep.subr.bf16.mxu0 0
        %834 = vmatpush1.bf16.msra.mxu0 0
        %835 = vmatprep.mubr.bf16.mxu0 0
        %836 = vmatmul.mubr.bf16.gmra.mrb[0].mxu0 %v798
        %v837 = vpop.f32.mrb[0].mxu0
        %v838 = vadd.f32 0.0, %v837
        %v839 = vpop.f32.mrb[0].mxu0
        %v840 = vpop.f32.mrb[0].mxu0
        %v841 = vpop.f32.mrb[0].mxu0
        %842 = vdwg.mxu0
        %843 = vrot.lane.b32.xlu0 %v510, 64
        %v844 = vpop.permute.xlu0 %843
        %v846 = vsel %vm515, %v744, 0
        %v849 = vsel %vm751, %v844, 0
        %851 = vmatprep.subr.bf16.mxu0 0
        %852 = vmatpush1.bf16.msra.mxu0 %v849
        %853 = vmatprep.subr.bf16.mxu0 0
        %854 = vmatpush1.bf16.msra.mxu0 0
        %855 = vmatprep.subr.bf16.mxu0 0
        %856 = vmatpush1.bf16.msra.mxu0 0
        %857 = vmatprep.subr.bf16.mxu0 0
        %858 = vmatpush1.bf16.msra.mxu0 0
        %859 = vmatprep.subr.bf16.mxu0 0
        %860 = vmatpush1.bf16.msra.mxu0 0
        %861 = vmatprep.subr.bf16.mxu0 0
        %862 = vmatpush1.bf16.msra.mxu0 0
        %863 = vmatprep.subr.bf16.mxu0 0
        %864 = vmatpush1.bf16.msra.mxu0 0
        %865 = vmatprep.subr.bf16.mxu0 0
        %866 = vmatpush1.bf16.msra.mxu0 0
        %867 = vmatprep.subr.bf16.mxu0 0
        %868 = vmatpush1.bf16.msra.mxu0 0
        %869 = vmatprep.subr.bf16.mxu0 0
        %870 = vmatpush1.bf16.msra.mxu0 0
        %871 = vmatprep.subr.bf16.mxu0 0
        %872 = vmatpush1.bf16.msra.mxu0 0
        %873 = vmatprep.subr.bf16.mxu0 0
        %874 = vmatpush1.bf16.msra.mxu0 0
        %875 = vmatprep.subr.bf16.mxu0 0
        %876 = vmatpush1.bf16.msra.mxu0 0
        %877 = vmatprep.subr.bf16.mxu0 0
        %878 = vmatpush1.bf16.msra.mxu0 0
        %879 = vmatprep.subr.bf16.mxu0 0
        %880 = vmatpush1.bf16.msra.mxu0 0
        %881 = vmatprep.subr.bf16.mxu0 0
        %882 = vmatpush1.bf16.msra.mxu0 0
        %883 = vmatprep.mubr.bf16.mxu0 0
        %884 = vmatmul.mubr.bf16.gmra.mrb[0].mxu0 %v846
        %v885 = vpop.f32.mrb[0].mxu0
        %v886 = vadd.f32 0.0, %v885
        %v887 = vpop.f32.mrb[0].mxu0
        %v888 = vpop.f32.mrb[0].mxu0
        %v889 = vpop.f32.mrb[0].mxu0
        %890 = vdwg.mxu0
        %891 = vrot.lane.b32.xlu0 %v512, 64
        %v892 = vpop.permute.xlu0 %891
        %v894 = vsel %vm515, %v745, 0
        %v897 = vsel %vm751, %v892, 0
        %899 = vmatprep.subr.bf16.mxu0 0
        %900 = vmatpush1.bf16.msra.mxu0 %v897
        %901 = vmatprep.subr.bf16.mxu0 0
        %902 = vmatpush1.bf16.msra.mxu0 0
        %903 = vmatprep.subr.bf16.mxu0 0
        %904 = vmatpush1.bf16.msra.mxu0 0
        %905 = vmatprep.subr.bf16.mxu0 0
        %906 = vmatpush1.bf16.msra.mxu0 0
        %907 = vmatprep.subr.bf16.mxu0 0
        %908 = vmatpush1.bf16.msra.mxu0 0
        %909 = vmatprep.subr.bf16.mxu0 0
        %910 = vmatpush1.bf16.msra.mxu0 0
        %911 = vmatprep.subr.bf16.mxu0 0
        %912 = vmatpush1.bf16.msra.mxu0 0
        %913 = vmatprep.subr.bf16.mxu0 0
        %914 = vmatpush1.bf16.msra.mxu0 0
        %915 = vmatprep.subr.bf16.mxu0 0
        %916 = vmatpush1.bf16.msra.mxu0 0
        %917 = vmatprep.subr.bf16.mxu0 0
        %918 = vmatpush1.bf16.msra.mxu0 0
        %919 = vmatprep.subr.bf16.mxu0 0
        %920 = vmatpush1.bf16.msra.mxu0 0
        %921 = vmatprep.subr.bf16.mxu0 0
        %922 = vmatpush1.bf16.msra.mxu0 0
        %923 = vmatprep.subr.bf16.mxu0 0
        %924 = vmatpush1.bf16.msra.mxu0 0
        %925 = vmatprep.subr.bf16.mxu0 0
        %926 = vmatpush1.bf16.msra.mxu0 0
        %927 = vmatprep.subr.bf16.mxu0 0
        %928 = vmatpush1.bf16.msra.mxu0 0
        %929 = vmatprep.subr.bf16.mxu0 0
        %930 = vmatpush1.bf16.msra.mxu0 0
        %931 = vmatprep.mubr.bf16.mxu0 0
        %932 = vmatmul.mubr.bf16.gmra.mrb[0].mxu0 %v894
        %v933 = vpop.f32.mrb[0].mxu0
        %v934 = vadd.f32 0.0, %v933
        %v935 = vpop.f32.mrb[0].mxu0
        %v936 = vpop.f32.mrb[0].mxu0
        %v937 = vpop.f32.mrb[0].mxu0
        %938 = vdwg.mxu0
        %v939 = vrcp.pop %v732
        %v940 = vrcp.pop %v735
        %v941 = vrcp.pop %v738
        %v942 = vrcp.pop %v741
        %v943 = vmul.f32 %v790, %v939
        %v944 = vmul.f32 %v838, %v940
        %v945 = vmul.f32 %v886, %v941
        %v946 = vmul.f32 %v934, %v942
        %v947 = vpack.c.bf16 %v943, %v943
        %v948 = vpack.c.bf16 %v944, %v944
        %v949 = vpack.c.bf16 %v945, %v945
        %v950 = vpack.c.bf16 %v946, %v946
        %v951 = vld [vmem:[%s3] sm:$0xf]
        %v952 = vld [vmem:[%s3 + $0x4] sm:$0xf]
        %v953 = vld [vmem:[%s3 + $0x8] sm:$0xf]
        %v954 = vld [vmem:[%s3 + $0xc] sm:$0xf]
        %v956 = vsel %vm515, %v947, 0
        %v959 = vsel %vm751, %v951, 0
        %961 = vmatprep.subr.bf16.mxu0 0
        %962 = vmatpush1.bf16.msra.mxu0 %v959
        %963 = vmatprep.subr.bf16.mxu0 0
        %964 = vmatpush1.bf16.msra.mxu0 0
        %965 = vmatprep.subr.bf16.mxu0 0
        %966 = vmatpush1.bf16.msra.mxu0 0
        %967 = vmatprep.subr.bf16.mxu0 0
        %968 = vmatpush1.bf16.msra.mxu0 0
        %969 = vmatprep.subr.bf16.mxu0 0
        %970 = vmatpush1.bf16.msra.mxu0 0
        %971 = vmatprep.subr.bf16.mxu0 0
        %972 = vmatpush1.bf16.msra.mxu0 0
        %973 = vmatprep.subr.bf16.mxu0 0
        %974 = vmatpush1.bf16.msra.mxu0 0
        %975 = vmatprep.subr.bf16.mxu0 0
        %976 = vmatpush1.bf16.msra.mxu0 0
        %977 = vmatprep.subr.bf16.mxu0 0
        %978 = vmatpush1.bf16.msra.mxu0 0
        %979 = vmatprep.subr.bf16.mxu0 0
        %980 = vmatpush1.bf16.msra.mxu0 0
        %981 = vmatprep.subr.bf16.mxu0 0
        %982 = vmatpush1.bf16.msra.mxu0 0
        %983 = vmatprep.subr.bf16.mxu0 0
        %984 = vmatpush1.bf16.msra.mxu0 0
        %985 = vmatprep.subr.bf16.mxu0 0
        %986 = vmatpush1.bf16.msra.mxu0 0
        %987 = vmatprep.subr.bf16.mxu0 0
        %988 = vmatpush1.bf16.msra.mxu0 0
        %989 = vmatprep.subr.bf16.mxu0 0
        %990 = vmatpush1.bf16.msra.mxu0 0
        %991 = vmatprep.subr.bf16.mxu0 0
        %992 = vmatpush1.bf16.msra.mxu0 0
        %993 = vmatprep.mubr.bf16.mxu0 0
        %994 = vmatmul.mubr.bf16.gmra.mrb[0].mxu0 %v956
        %v995 = vpop.f32.mrb[0].mxu0
        %v996 = vadd.f32 0.0, %v995
        %v997 = vpop.f32.mrb[0].mxu0
        %v998 = vpop.f32.mrb[0].mxu0
        %v999 = vpop.f32.mrb[0].mxu0
        %1000 = vdwg.mxu0
        %v1002 = vsel %vm515, %v948, 0
        %v1005 = vsel %vm751, %v952, 0
        %1007 = vmatprep.subr.bf16.mxu0 0
        %1008 = vmatpush1.bf16.msra.mxu0 %v1005
        %1009 = vmatprep.subr.bf16.mxu0 0
        %1010 = vmatpush1.bf16.msra.mxu0 0
        %1011 = vmatprep.subr.bf16.mxu0 0
        %1012 = vmatpush1.bf16.msra.mxu0 0
        %1013 = vmatprep.subr.bf16.mxu0 0
        %1014 = vmatpush1.bf16.msra.mxu0 0
        %1015 = vmatprep.subr.bf16.mxu0 0
        %1016 = vmatpush1.bf16.msra.mxu0 0
        %1017 = vmatprep.subr.bf16.mxu0 0
        %1018 = vmatpush1.bf16.msra.mxu0 0
        %1019 = vmatprep.subr.bf16.mxu0 0
        %1020 = vmatpush1.bf16.msra.mxu0 0
        %1021 = vmatprep.subr.bf16.mxu0 0
        %1022 = vmatpush1.bf16.msra.mxu0 0
        %1023 = vmatprep.subr.bf16.mxu0 0
        %1024 = vmatpush1.bf16.msra.mxu0 0
        %1025 = vmatprep.subr.bf16.mxu0 0
        %1026 = vmatpush1.bf16.msra.mxu0 0
        %1027 = vmatprep.subr.bf16.mxu0 0
        %1028 = vmatpush1.bf16.msra.mxu0 0
        %1029 = vmatprep.subr.bf16.mxu0 0
        %1030 = vmatpush1.bf16.msra.mxu0 0
        %1031 = vmatprep.subr.bf16.mxu0 0
        %1032 = vmatpush1.bf16.msra.mxu0 0
        %1033 = vmatprep.subr.bf16.mxu0 0
        %1034 = vmatpush1.bf16.msra.mxu0 0
        %1035 = vmatprep.subr.bf16.mxu0 0
        %1036 = vmatpush1.bf16.msra.mxu0 0
        %1037 = vmatprep.subr.bf16.mxu0 0
        %1038 = vmatpush1.bf16.msra.mxu0 0
        %1039 = vmatprep.mubr.bf16.mxu0 0
        %1040 = vmatmul.mubr.bf16.gmra.mrb[0].mxu0 %v1002
        %v1041 = vpop.f32.mrb[0].mxu0
        %v1042 = vadd.f32 0.0, %v1041
        %v1043 = vpop.f32.mrb[0].mxu0
        %v1044 = vpop.f32.mrb[0].mxu0
        %v1045 = vpop.f32.mrb[0].mxu0
        %1046 = vdwg.mxu0
        %v1048 = vsel %vm515, %v949, 0
        %v1051 = vsel %vm751, %v953, 0
        %1053 = vmatprep.subr.bf16.mxu0 0
        %1054 = vmatpush1.bf16.msra.mxu0 %v1051
        %1055 = vmatprep.subr.bf16.mxu0 0
        %1056 = vmatpush1.bf16.msra.mxu0 0
        %1057 = vmatprep.subr.bf16.mxu0 0
        %1058 = vmatpush1.bf16.msra.mxu0 0
        %1059 = vmatprep.subr.bf16.mxu0 0
        %1060 = vmatpush1.bf16.msra.mxu0 0
        %1061 = vmatprep.subr.bf16.mxu0 0
        %1062 = vmatpush1.bf16.msra.mxu0 0
        %1063 = vmatprep.subr.bf16.mxu0 0
        %1064 = vmatpush1.bf16.msra.mxu0 0
        %1065 = vmatprep.subr.bf16.mxu0 0
        %1066 = vmatpush1.bf16.msra.mxu0 0
        %1067 = vmatprep.subr.bf16.mxu0 0
        %1068 = vmatpush1.bf16.msra.mxu0 0
        %1069 = vmatprep.subr.bf16.mxu0 0
        %1070 = vmatpush1.bf16.msra.mxu0 0
        %1071 = vmatprep.subr.bf16.mxu0 0
        %1072 = vmatpush1.bf16.msra.mxu0 0
        %1073 = vmatprep.subr.bf16.mxu0 0
        %1074 = vmatpush1.bf16.msra.mxu0 0
        %1075 = vmatprep.subr.bf16.mxu0 0
        %1076 = vmatpush1.bf16.msra.mxu0 0
        %1077 = vmatprep.subr.bf16.mxu0 0
        %1078 = vmatpush1.bf16.msra.mxu0 0
        %1079 = vmatprep.subr.bf16.mxu0 0
        %1080 = vmatpush1.bf16.msra.mxu0 0
        %1081 = vmatprep.subr.bf16.mxu0 0
        %1082 = vmatpush1.bf16.msra.mxu0 0
        %1083 = vmatprep.subr.bf16.mxu0 0
        %1084 = vmatpush1.bf16.msra.mxu0 0
        %1085 = vmatprep.mubr.bf16.mxu0 0
        %1086 = vmatmul.mubr.bf16.gmra.mrb[0].mxu0 %v1048
        %v1087 = vpop.f32.mrb[0].mxu0
        %v1088 = vadd.f32 0.0, %v1087
        %v1089 = vpop.f32.mrb[0].mxu0
        %v1090 = vpop.f32.mrb[0].mxu0
        %v1091 = vpop.f32.mrb[0].mxu0
        %1092 = vdwg.mxu0
        %v1094 = vsel %vm515, %v950, 0
        %v1097 = vsel %vm751, %v954, 0
        %1099 = vmatprep.subr.bf16.mxu0 0
        %1100 = vmatpush1.bf16.msra.mxu0 %v1097
        %1101 = vmatprep.subr.bf16.mxu0 0
        %1102 = vmatpush1.bf16.msra.mxu0 0
        %1103 = vmatprep.subr.bf16.mxu0 0
        %1104 = vmatpush1.bf16.msra.mxu0 0
        %1105 = vmatprep.subr.bf16.mxu0 0
        %1106 = vmatpush1.bf16.msra.mxu0 0
        %1107 = vmatprep.subr.bf16.mxu0 0
        %1108 = vmatpush1.bf16.msra.mxu0 0
        %1109 = vmatprep.subr.bf16.mxu0 0
        %1110 = vmatpush1.bf16.msra.mxu0 0
        %1111 = vmatprep.subr.bf16.mxu0 0
        %1112 = vmatpush1.bf16.msra.mxu0 0
        %1113 = vmatprep.subr.bf16.mxu0 0
        %1114 = vmatpush1.bf16.msra.mxu0 0
        %1115 = vmatprep.subr.bf16.mxu0 0
        %1116 = vmatpush1.bf16.msra.mxu0 0
        %1117 = vmatprep.subr.bf16.mxu0 0
        %1118 = vmatpush1.bf16.msra.mxu0 0
        %1119 = vmatprep.subr.bf16.mxu0 0
        %1120 = vmatpush1.bf16.msra.mxu0 0
        %1121 = vmatprep.subr.bf16.mxu0 0
        %1122 = vmatpush1.bf16.msra.mxu0 0
        %1123 = vmatprep.subr.bf16.mxu0 0
        %1124 = vmatpush1.bf16.msra.mxu0 0
        %1125 = vmatprep.subr.bf16.mxu0 0
        %1126 = vmatpush1.bf16.msra.mxu0 0
        %1127 = vmatprep.subr.bf16.mxu0 0
        %1128 = vmatpush1.bf16.msra.mxu0 0
        %1129 = vmatprep.subr.bf16.mxu0 0
        %1130 = vmatpush1.bf16.msra.mxu0 0
        %1131 = vmatprep.mubr.bf16.mxu0 0
        %1132 = vmatmul.mubr.bf16.gmra.mrb[0].mxu0 %v1094
        %v1133 = vpop.f32.mrb[0].mxu0
        %v1134 = vadd.f32 0.0, %v1133
        %v1135 = vpop.f32.mrb[0].mxu0
        %v1136 = vpop.f32.mrb[0].mxu0
        %v1137 = vpop.f32.mrb[0].mxu0
        %1138 = vdwg.mxu0
        %v1139 = vsel %vm401, %v996, 0.0
        %v1140 = vsel %vm401, %v1042, 0.0
        %v1141 = vadd.f32 %v1139, %v1140
        %v1142 = vsel %vm401, %v1088, 0.0
        %v1143 = vadd.f32 %v1141, %v1142
        %v1144 = vsel %vm401, %v1134, 0.0
        %v1145 = vadd.f32 %v1143, %v1144
        %v1146 = vld [vmem:[%s4] sm:$0x1]
        %v1148 = vlaneseq
        %v1149 = vshrl.u32 %v1148, 7
        %v1150 = vsub.s32 0, %v1149
        %v1151 = vrot.slane %v1146, %v1150
        %v1153 = vadd.f32 %v1145, %v1151
        %v1154 = vadd.f32 %v398, %v1153
        %v1155 = vsel %vm401, %v1154, 0.0
        %1156 = vadd.xlane.f32.xlu0 %v1155
        %v1157 = vpop.xlane.xlu0 %1156
        %v1158 = vmul.f32 %v1157, %v405
        %v1159 = vsub.f32 %v1154, %v1158
        %v1160 = vmul.f32 %v1159, %v1159
        %v1161 = vsel %vm401, %v1160, 0.0
        %1162 = vadd.xlane.f32.xlu0 %v1161
        %v1163 = vpop.xlane.xlu0 %1162
        %v1164 = vmul.f32 %v1163, 0.032258064
        %v1165 = vrsqrt.pop %v1164
        %v1166 = vmul.f32 %v1164, %v1165
        %vm1167 = vcmp.eq.f32.partialorder %v1164, inf
        %v1168 = vsel %vm1167, %v1164, %v1166
        %vm1169 = vcmp.eq.f32.partialorder %v1164, 0.0
        %v1170 = vand.u32 %v1164, 2147483648
        %v1171 = vsel %vm1169, %v1170, %v1168
        %v1172 = vadd.f32 %v1171, 1e-06
        %v1173 = vrcp.pop %v1172
        %v1174 = vmul.f32 1.0, %v1173
        %v1175 = vmul.f32 %v427, %v1159
        %v1176 = vmul.f32 %v1175, %v1174
        %v1177 = vadd.f32 %v1176, %v435
        %v1178 = vpack.c.bf16 %v1177, %v1177
        %v1179 = vld [vmem:[#allocation2] sm:$0xf]
        %v1180 = vld [vmem:[#allocation2 + $0x4] sm:$0xf]
        %v1181 = vld [vmem:[#allocation2 + $0x8] sm:$0xf]
        %v1182 = vld [vmem:[#allocation2 + $0xc] sm:$0xf]
        %v1183 = vld [vmem:[%s8] sm:$0x1]
        %v1185 = vlaneseq
        %v1186 = vshrl.u32 %v1185, 7
        %v1187 = vsub.s32 0, %v1186
        %v1188 = vrot.slane %v1183, %v1187
        %v1194 = vunpack.c.l.b16 %v1179
        %v1195 = vunpack.c.l.b16 %v1180
        %v1196 = vunpack.c.l.b16 %v1181
        %v1197 = vunpack.c.l.b16 %v1182
        %v1198 = vpack.c.b16 %v1195, %v1194
        %v1199 = vpack.c.b16 %v1197, %v1196
        %v1203 = vsel %vm401, %v1178, 0
        %1205 = vmatprep.subr.bf16.mxu0 0
        %1206 = vmatpush1.bf16.msra.mxu0 %v1198
        %1207 = vmatprep.subr.bf16.mxu0 0
        %1208 = vmatpush1.bf16.msra.mxu0 %v1199
        %1209 = vmatprep.subr.bf16.mxu0 0
        %1210 = vmatpush1.bf16.msra.mxu0 0
        %1211 = vmatprep.subr.bf16.mxu0 0
        %1212 = vmatpush1.bf16.msra.mxu0 0
        %1213 = vmatprep.subr.bf16.mxu0 0
        %1214 = vmatpush1.bf16.msra.mxu0 0
        %1215 = vmatprep.subr.bf16.mxu0 0
        %1216 = vmatpush1.bf16.msra.mxu0 0
        %1217 = vmatprep.subr.bf16.mxu0 0
        %1218 = vmatpush1.bf16.msra.mxu0 0
        %1219 = vmatprep.subr.bf16.mxu0 0
        %1220 = vmatpush1.bf16.msra.mxu0 0
        %1221 = vmatprep.subr.bf16.mxu0 0
        %1222 = vmatpush1.bf16.msra.mxu0 0
        %1223 = vmatprep.subr.bf16.mxu0 0
        %1224 = vmatpush1.bf16.msra.mxu0 0
        %1225 = vmatprep.subr.bf16.mxu0 0
        %1226 = vmatpush1.bf16.msra.mxu0 0
        %1227 = vmatprep.subr.bf16.mxu0 0
        %1228 = vmatpush1.bf16.msra.mxu0 0
        %1229 = vmatprep.subr.bf16.mxu0 0
        %1230 = vmatpush1.bf16.msra.mxu0 0
        %1231 = vmatprep.subr.bf16.mxu0 0
        %1232 = vmatpush1.bf16.msra.mxu0 0
        %1233 = vmatprep.subr.bf16.mxu0 0
        %1234 = vmatpush1.bf16.msra.mxu0 0
        %1235 = vmatprep.subr.bf16.mxu0 0
        %1236 = vmatpush1.bf16.msra.mxu0 0
        %1237 = vmatprep.mubr.bf16.mxu0 0
        %1238 = vmatmul.mubr.bf16.gmra.mrb[0].mxu0 %v1203
        %v1239 = vpop.f32.mrb[0].mxu0
        %v1240 = vadd.f32 %v1188, %v1239
        %v1241 = vpop.f32.mrb[0].mxu0
        %v1242 = vpop.f32.mrb[0].mxu0
        %v1243 = vpop.f32.mrb[0].mxu0
        %1244 = vdwg.mxu0
        %v1245 = vmax.f32 %v1240, 0.0
        %v1246 = vpack.c.bf16 %v1245, %v1245
        %v1247 = vld [vmem:[%s9] sm:$0xf]
        %v1248 = vld [vmem:[%s9 + $0x4] sm:$0xf]
        %v1249 = vld [vmem:[%s9 + $0x8] sm:$0xf]
        %v1250 = vld [vmem:[%s9 + $0xc] sm:$0xf]
        %v1251 = vld [vmem:[%s9 + $0x10] sm:$0xf]
        %v1252 = vld [vmem:[%s9 + $0x14] sm:$0xf]
        %v1253 = vld [vmem:[%s9 + $0x18] sm:$0xf]
        %v1254 = vld [vmem:[%s9 + $0x1c] sm:$0xf]
        %v1255 = vld [vmem:[%s10] sm:$0x1]
        %v1257 = vlaneseq
        %v1258 = vshrl.u32 %v1257, 7
        %v1259 = vsub.s32 0, %v1258
        %v1260 = vrot.slane %v1255, %v1259
        %v1270 = vunpack.c.l.b16 %v1247
        %v1271 = vunpack.c.l.b16 %v1248
        %v1272 = vunpack.c.l.b16 %v1249
        %v1273 = vunpack.c.l.b16 %v1250
        %v1274 = vunpack.c.l.b16 %v1251
        %v1275 = vunpack.c.l.b16 %v1252
        %v1276 = vunpack.c.l.b16 %v1253
        %v1277 = vunpack.c.l.b16 %v1254
        %v1278 = vpack.c.b16 %v1271, %v1270
        %v1279 = vpack.c.b16 %v1273, %v1272
        %v1280 = vpack.c.b16 %v1275, %v1274
        %v1281 = vpack.c.b16 %v1277, %v1276
        %vm1286 = vcmask 523264
        %v1288 = vsel %vm1286, %v1246, 0
        %1290 = vmatprep.subr.bf16.mxu0 0
        %1291 = vmatpush1.bf16.msra.mxu0 %v1278
        %1292 = vmatprep.subr.bf16.mxu0 0
        %1293 = vmatpush1.bf16.msra.mxu0 %v1279
        %1294 = vmatprep.subr.bf16.mxu0 0
        %1295 = vmatpush1.bf16.msra.mxu0 %v1280
        %1296 = vmatprep.subr.bf16.mxu0 0
        %1297 = vmatpush1.bf16.msra.mxu0 %v1281
        %1298 = vmatprep.subr.bf16.mxu0 0
        %1299 = vmatpush1.bf16.msra.mxu0 0
        %1300 = vmatprep.subr.bf16.mxu0 0
        %1301 = vmatpush1.bf16.msra.mxu0 0
        %1302 = vmatprep.subr.bf16.mxu0 0
        %1303 = vmatpush1.bf16.msra.mxu0 0
        %1304 = vmatprep.subr.bf16.mxu0 0
        %1305 = vmatpush1.bf16.msra.mxu0 0
        %1306 = vmatprep.subr.bf16.mxu0 0
        %1307 = vmatpush1.bf16.msra.mxu0 0
        %1308 = vmatprep.subr.bf16.mxu0 0
        %1309 = vmatpush1.bf16.msra.mxu0 0
        %1310 = vmatprep.subr.bf16.mxu0 0
        %1311 = vmatpush1.bf16.msra.mxu0 0
        %1312 = vmatprep.subr.bf16.mxu0 0
        %1313 = vmatpush1.bf16.msra.mxu0 0
        %1314 = vmatprep.subr.bf16.mxu0 0
        %1315 = vmatpush1.bf16.msra.mxu0 0
        %1316 = vmatprep.subr.bf16.mxu0 0
        %1317 = vmatpush1.bf16.msra.mxu0 0
        %1318 = vmatprep.subr.bf16.mxu0 0
        %1319 = vmatpush1.bf16.msra.mxu0 0
        %1320 = vmatprep.subr.bf16.mxu0 0
        %1321 = vmatpush1.bf16.msra.mxu0 0
        %1322 = vmatprep.mubr.bf16.mxu0 0
        %1323 = vmatmul.mubr.bf16.gmra.mrb[0].mxu0 %v1288
        %v1324 = vpop.f32.mrb[0].mxu0
        %v1325 = vadd.f32 %v1260, %v1324
        %v1326 = vpop.f32.mrb[0].mxu0
        %v1327 = vpop.f32.mrb[0].mxu0
        %v1328 = vpop.f32.mrb[0].mxu0
        %1329 = vdwg.mxu0
        %v1330 = vadd.f32 %v1154, %v1325
        %1331 = vst.msk [vmem:[%s392] sm:$0xff] %vm401, %v1330
        %s1332 = sand.u32 %s270, 1
        %s1333 = scalar_lea.sflag [#allocation4], %s1332
        %s1334 = sand.u32 %s270, 1
        %s1335 = smul.addr %s1334, 8
        %s1336 = scalar_lea.vmem [#allocation5], %s1335
        // Predicated region
        $region69: #{tpu_custom_call.1} parent=63 // pred_check
          %p1337 = pneg %p280
        $region70: #{tpu_custom_call.1} parent=63 // pred_check_branch
          %1339 = sbr.rel (%p1337) target = $region72
        $region71: #{tpu_custom_call.1} parent=63 // pred_region
          %s1341 = ssub.s32 128, 128
          %1342 = vsyncadd %s1333, %s1341
          %s1343 = smul.addr %s26, 128
          %s1344 = scalar_lea.hbm %s11, %s1343
          %s1346 = sshll.u32 %s1336, 4
          %s1347 = int_to_ptr.vmem [resolvable:$true] %s1346
          %1349 = dma.vmem_to_hbm [thread:$0]  %s1347, 128, %s1344, %s1333
        $region72: #{tpu_custom_call.1} parent=63 // pred_fallthru
          _
      $region64: #{tpu_custom_call.1} parent=5 // pred_fallthru
        _
      %p1350 = scmp.le.s32.totalorder 2, %s21
      // Predicated region
      $region73: #{tpu_custom_call.1} parent=5 // pred_check
        %p1351 = pneg %p1350
      $region74: #{tpu_custom_call.1} parent=5 // pred_check_branch
        %1353 = sbr.rel (%p1351) target = $region76
      $region75: #{tpu_custom_call.1} parent=5 // pred_region
        %s1354 = ssub.s32 %s21, 2
        // Predicated region
        $region77: #{tpu_custom_call.1} parent=75 // pred_check
          %p1355 = pneg %p286
        $region78: #{tpu_custom_call.1} parent=75 // pred_check_branch
          %1357 = sbr.rel (%p1355) target = $region80
        $region79: #{tpu_custom_call.1} parent=75 // pred_region
          %s1358 = sand.u32 %s271, 1
          %s1359 = scalar_lea.sflag [#allocation4], %s1358
          %s1360 = sand.u32 %s271, 1
          %s1361 = smul.addr %s1360, 8
          %s1362 = scalar_lea.vmem [#allocation5], %s1361
          %1363 = dma.done %s1359, 128
        $region80: #{tpu_custom_call.1} parent=75 // pred_fallthru
          _
      $region76: #{tpu_custom_call.1} parent=5 // pred_fallthru
        _
    $region6: #{tpu_custom_call.1} parent=1 // loop_footer
      %s25 = sadd.s32 1, %s21
    $region7: #{tpu_custom_call.1} parent=1 // loop_footer_branch
      %20 = sbr.rel target = $region3
    $region8: #{tpu_custom_call.1} parent=1 // loop_exit
      _
    %1364 = vsyncpa [#allocation3], 1
    %s1365 = scalar_lea.sflag [#allocation3], 1
    %1366 = vsyncpa %s1365, 1
    %1367 = vsyncpa [#allocation4], 1
    %s1368 = scalar_lea.sflag [#allocation4], 1
    %1369 = vsyncpa %s1368, 1

</llo_original>
